<compile_context>
chip_gen: v6e
topology: v6e:2x2x1
jax: 0.10.0
libtpu: 0.0.40
codegen_flags: <defaults>
</compile_context>

<pallas_src>
import functools

import jax
import jax.numpy as jnp
from jax import lax
from jax.experimental import pallas as pl
from jax.experimental.pallas import tpu as pltpu


def _round_up(x, m):
    return ((x + m - 1) // m) * m


def _dws_conv3d_kernel(x_ref, dww_ref, pw_ref, bias_ref, o_ref, *,
                       kd, kh, kw, lrow, wp, acclen, n_blk):
    # x_ref   : (n_blk, CK, XLEN)   channel-replicated flat padded volume, row j = ci*kpl + m
    # dww_ref : (CK, ntaps)         depthwise weights, col = a*kh*kw + b*kw + c
    # pw_ref  : (Cout, CK)          pointwise weights (native PyTorch layout)
    # bias_ref: (Cout, 1)           effective bias = pw_w @ dw_b + pw_b
    # o_ref   : (n_blk, Cout, ACCLEN)  flat output index = d*lrow + h*wp + w
    ck = dww_ref.shape[0]
    wlen = acclen + kw - 1

    # Hoisted weight loads: one vld each, sliced as values below.
    dww = dww_ref[...]            # (CK, ntaps)
    pw = pw_ref[...]              # (Cout, CK)
    bias = bias_ref[...]          # (Cout, 1)

    for nb in range(n_blk):       # statically unrolled batch block
        acc = jnp.zeros((ck, acclen), jnp.float32)
        for a in range(kd):       # statically unrolled taps -> static offsets
            for b in range(kh):
                row_off = a * lrow + b * wp
                # One window load per (a, b); the kw shifts are value slices of it.
                window = x_ref[nb, :, pl.ds(row_off, wlen)]          # (CK, wlen)
                for c in range(kw):
                    col = (a * kh + b) * kw + c
                    patch = window[:, c:c + acclen]                  # (CK, acclen)
                    wcol = dww[:, col:col + 1]                       # (CK, 1)
                    acc = acc + patch * wcol

        # Pointwise 1x1x1 conv + folded bias on the MXU.
        out = jnp.dot(pw, acc, preferred_element_type=jnp.float32) + bias
        o_ref[nb] = out.astype(o_ref.dtype)


def depthwise_separable_conv3d(x_ncdhw, dw_w, dw_b, pw_w, pw_b, *, padding, kpl,
                               batch_block=1):
    """x: (N, Cin, D, H, W); dw_w: (Cin*kpl, kd, kh, kw); dw_b: (Cin*kpl,);
    pw_w: (Cout, Cin*kpl); pw_b: (Cout,). Returns NCDHW output."""
    N, Cin, D, H, W = x_ncdhw.shape
    CK, kd, kh, kw = dw_w.shape
    assert CK == Cin * kpl
    Cout = pw_w.shape[0]
    assert N % batch_block == 0
    p = padding
    ntaps = kd * kh * kw

    Dp, Hp, Wp = D + 2 * p, H + 2 * p, W + 2 * p
    Dout, Hout, Wout = Dp - kd + 1, Hp - kh + 1, Wp - kw + 1
    lrow = Hp * Wp                                    # flat stride per depth slice

    acclen = _round_up(Dout * lrow, 128)              # lane-dense output block
    maxoff = (kd - 1) * lrow + (kh - 1) * Wp + (kw - 1)
    need_flat = acclen + maxoff                       # keeps every window load in-bounds
    d_extra = max(0, (need_flat - Dp * lrow + lrow - 1) // lrow)
    xlen = (Dp + d_extra) * lrow

    # Single fused pad: spatial padding plus extra zero depth slices covering the flat tail.
    xp = jnp.pad(x_ncdhw, ((0, 0), (0, 0), (p, p + d_extra), (p, p), (p, p)))
    xflat = xp.reshape(N, Cin, xlen)
    # Replicate channels kpl times so row j = ci*kpl + m (PyTorch depthwise out-channel order).
    xrep = jnp.repeat(xflat, kpl, axis=1)             # (N, CK, xlen)

    dww_k = dw_w.reshape(CK, ntaps)                   # native layout, no transpose
    pw_k = pw_w                                       # (Cout, CK), native layout
    bias_k = (pw_w @ dw_b + pw_b).reshape(Cout, 1)    # fold depthwise bias through pointwise

    kernel = functools.partial(_dws_conv3d_kernel, kd=kd, kh=kh, kw=kw,
                               lrow=lrow, wp=Wp, acclen=acclen, n_blk=batch_block)

    out_flat = pl.pallas_call(
        kernel,
        out_shape=jax.ShapeDtypeStruct((N, Cout, acclen), jnp.float32),
        grid=(N // batch_block,),
        in_specs=[
            pl.BlockSpec((batch_block, CK, xlen), lambda n: (n, 0, 0)),
            pl.BlockSpec((CK, ntaps), lambda n: (0, 0)),
            pl.BlockSpec((Cout, CK), lambda n: (0, 0)),
            pl.BlockSpec((Cout, 1), lambda n: (0, 0)),
        ],
        out_specs=pl.BlockSpec((batch_block, Cout, acclen), lambda n: (n, 0, 0)),
        compiler_params=pltpu.CompilerParams(
            dimension_semantics=("parallel",),
        ),
    )(xrep, dww_k, pw_k, bias_k)

    # Valid outputs live at flat index d*lrow + h*Wp + w: slice + reshape only, no transpose.
    out = out_flat[:, :, :Dout * lrow].reshape(N, Cout, Dout, Hp, Wp)
    return out[:, :, :, :Hout, :Wout]                 # (N, Cout, Dout, Hout, Wout) = NCDHW


def _reference(x, dw_w, dw_b, pw_w, pw_b, padding):
    """Pure-JAX reference matching PyTorch Conv3d semantics (NCDHW)."""
    Cin = x.shape[1]
    dw_kernel = dw_w.reshape(dw_w.shape[0], 1, *dw_w.shape[1:])   # (Cin*kpl, 1, kd, kh, kw)
    dn1 = lax.conv_dimension_numbers(x.shape, dw_kernel.shape, ('NCDHW', 'OIDHW', 'NCDHW'))
    dw = lax.conv_general_dilated(x, dw_kernel, (1, 1, 1),
                                  [(padding, padding)] * 3,
                                  dimension_numbers=dn1,
                                  feature_group_count=Cin)
    dw = dw + dw_b[None, :, None, None, None]
    pw_kernel = pw_w.reshape(pw_w.shape[0], pw_w.shape[1], 1, 1, 1)
    dn2 = lax.conv_dimension_numbers(dw.shape, pw_kernel.shape, ('NCDHW', 'OIDHW', 'NCDHW'))
    pw = lax.conv_general_dilated(dw, pw_kernel, (1, 1, 1), [(0, 0)] * 3,
                                  dimension_numbers=dn2)
    return pw + pw_b[None, :, None, None, None]


if __name__ == "__main__":
    # Module config (small, consistent with the forward): nin=4, nout=8, k=3, pad=1, kpl=2
    N, Cin, D, H, W = 2, 4, 8, 8, 8
    Cout, K, PAD, KPL = 8, 3, 1, 2

    key = jax.random.PRNGKey(0)
    kx, k1, k2, k3, k4 = jax.random.split(key, 5)
    x = jax.random.normal(kx, (N, Cin, D, H, W), jnp.float32)
    dw_w = jax.random.normal(k1, (Cin * KPL, K, K, K), jnp.float32) * 0.1
    dw_b = jax.random.normal(k2, (Cin * KPL,), jnp.float32) * 0.1
    pw_w = jax.random.normal(k3, (Cout, Cin * KPL), jnp.float32) * 0.1
    pw_b = jax.random.normal(k4, (Cout,), jnp.float32) * 0.1

    # batch_block=1 keeps one batch element per grid step (both v7x TCs busy with N=2);
    # raise it on single-TC v5e/v6e to amortize per-step overhead.
    out = depthwise_separable_conv3d(x, dw_w, dw_b, pw_w, pw_b,
                                     padding=PAD, kpl=KPL, batch_block=1)
    out = jax.block_until_ready(out)

    ref = _reference(x, dw_w, dw_b, pw_w, pw_b, PAD)
    assert out.shape == (N, Cout, D, H, W), out.shape
    err = float(jnp.max(jnp.abs(out - ref)))
    assert jnp.allclose(out, ref, atol=1e-4, rtol=1e-4), err

    print("KERNEL_OK")
</pallas_src>

<mosaic_0001>
module attributes {stable_mosaic.version = 11 : i64} {
  func.func @_dws_conv3d_kernel(%arg0: i32, %arg1: memref<1x8x1200xf32, #tpu.memory_space<vmem>>, %arg2: memref<8x27xf32, #tpu.memory_space<vmem>>, %arg3: memref<8x8xf32, #tpu.memory_space<vmem>>, %arg4: memref<8x1xf32, #tpu.memory_space<vmem>>, %arg5: memref<1x8x896xf32, #tpu.memory_space<vmem>>) attributes {dimension_semantics = [#tpu.dimension_semantics<parallel>], iteration_bounds = array<i64: 2>, scalar_prefetch = 0 : i64, scratch_operands = 0 : i64, tpu.core_type = #tpu.core_type<tc>, window_params = [{transform_indices = @transform_0, window_bounds = array<i64: 1, 8, 1200>}, {pipeline_mode = #tpu.pipeline_mode<synchronous>, transform_indices = @transform_1, window_bounds = array<i64: 8, 27>}, {pipeline_mode = #tpu.pipeline_mode<synchronous>, transform_indices = @transform_2, window_bounds = array<i64: 8, 8>}, {pipeline_mode = #tpu.pipeline_mode<synchronous>, transform_indices = @transform_3, window_bounds = array<i64: 8, 1>}, {transform_indices = @transform_4, window_bounds = array<i64: 1, 8, 896>}]} {
    %c0 = arith.constant 0 : index
    %c0_0 = arith.constant 0 : index
    %0 = vector.load %arg2[%c0, %c0_0] : memref<8x27xf32, #tpu.memory_space<vmem>>, vector<8x27xf32>
    %c0_1 = arith.constant 0 : index
    %c0_2 = arith.constant 0 : index
    %1 = vector.load %arg3[%c0_1, %c0_2] : memref<8x8xf32, #tpu.memory_space<vmem>>, vector<8x8xf32>
    %c0_3 = arith.constant 0 : index
    %c0_4 = arith.constant 0 : index
    %2 = vector.load %arg4[%c0_3, %c0_4] : memref<8x1xf32, #tpu.memory_space<vmem>>, vector<8x1xf32>
    %cst = arith.constant 0.000000e+00 : f32
    %3 = vector.broadcast %cst : f32 to vector<8x896xf32>
    %c0_5 = arith.constant 0 : index
    %c0_6 = arith.constant 0 : index
    %c0_7 = arith.constant 0 : index
    %4 = vector.load %arg1[%c0_5, %c0_6, %c0_7] : memref<1x8x1200xf32, #tpu.memory_space<vmem>>, vector<1x8x898xf32>
    %5 = vector.shape_cast %4 : vector<1x8x898xf32> to vector<8x898xf32>
    %6 = vector.extract_strided_slice %5 {offsets = [0, 0], sizes = [8, 896], strides = [1, 1]} : vector<8x898xf32> to vector<8x896xf32>
    %7 = vector.extract_strided_slice %0 {offsets = [0, 0], sizes = [8, 1], strides = [1, 1]} : vector<8x27xf32> to vector<8x1xf32>
    %8 = vector.broadcast %7 : vector<8x1xf32> to vector<8x896xf32>
    %9 = arith.mulf %6, %8 : vector<8x896xf32>
    %10 = arith.addf %3, %9 : vector<8x896xf32>
    %11 = vector.extract_strided_slice %5 {offsets = [0, 1], sizes = [8, 896], strides = [1, 1]} : vector<8x898xf32> to vector<8x896xf32>
    %12 = vector.extract_strided_slice %0 {offsets = [0, 1], sizes = [8, 1], strides = [1, 1]} : vector<8x27xf32> to vector<8x1xf32>
    %13 = vector.broadcast %12 : vector<8x1xf32> to vector<8x896xf32>
    %14 = arith.mulf %11, %13 : vector<8x896xf32>
    %15 = arith.addf %10, %14 : vector<8x896xf32>
    %16 = vector.extract_strided_slice %5 {offsets = [0, 2], sizes = [8, 896], strides = [1, 1]} : vector<8x898xf32> to vector<8x896xf32>
    %17 = vector.extract_strided_slice %0 {offsets = [0, 2], sizes = [8, 1], strides = [1, 1]} : vector<8x27xf32> to vector<8x1xf32>
    %18 = vector.broadcast %17 : vector<8x1xf32> to vector<8x896xf32>
    %19 = arith.mulf %16, %18 : vector<8x896xf32>
    %20 = arith.addf %15, %19 : vector<8x896xf32>
    %c0_8 = arith.constant 0 : index
    %c0_9 = arith.constant 0 : index
    %c10 = arith.constant 10 : index
    %21 = vector.load %arg1[%c0_8, %c0_9, %c10] : memref<1x8x1200xf32, #tpu.memory_space<vmem>>, vector<1x8x898xf32>
    %22 = vector.shape_cast %21 : vector<1x8x898xf32> to vector<8x898xf32>
    %23 = vector.extract_strided_slice %22 {offsets = [0, 0], sizes = [8, 896], strides = [1, 1]} : vector<8x898xf32> to vector<8x896xf32>
    %24 = vector.extract_strided_slice %0 {offsets = [0, 3], sizes = [8, 1], strides = [1, 1]} : vector<8x27xf32> to vector<8x1xf32>
    %25 = vector.broadcast %24 : vector<8x1xf32> to vector<8x896xf32>
    %26 = arith.mulf %23, %25 : vector<8x896xf32>
    %27 = arith.addf %20, %26 : vector<8x896xf32>
    %28 = vector.extract_strided_slice %22 {offsets = [0, 1], sizes = [8, 896], strides = [1, 1]} : vector<8x898xf32> to vector<8x896xf32>
    %29 = vector.extract_strided_slice %0 {offsets = [0, 4], sizes = [8, 1], strides = [1, 1]} : vector<8x27xf32> to vector<8x1xf32>
    %30 = vector.broadcast %29 : vector<8x1xf32> to vector<8x896xf32>
    %31 = arith.mulf %28, %30 : vector<8x896xf32>
    %32 = arith.addf %27, %31 : vector<8x896xf32>
    %33 = vector.extract_strided_slice %22 {offsets = [0, 2], sizes = [8, 896], strides = [1, 1]} : vector<8x898xf32> to vector<8x896xf32>
    %34 = vector.extract_strided_slice %0 {offsets = [0, 5], sizes = [8, 1], strides = [1, 1]} : vector<8x27xf32> to vector<8x1xf32>
    %35 = vector.broadcast %34 : vector<8x1xf32> to vector<8x896xf32>
    %36 = arith.mulf %33, %35 : vector<8x896xf32>
    %37 = arith.addf %32, %36 : vector<8x896xf32>
    %c0_10 = arith.constant 0 : index
    %c0_11 = arith.constant 0 : index
    %c20 = arith.constant 20 : index
    %38 = vector.load %arg1[%c0_10, %c0_11, %c20] : memref<1x8x1200xf32, #tpu.memory_space<vmem>>, vector<1x8x898xf32>
    %39 = vector.shape_cast %38 : vector<1x8x898xf32> to vector<8x898xf32>
    %40 = vector.extract_strided_slice %39 {offsets = [0, 0], sizes = [8, 896], strides = [1, 1]} : vector<8x898xf32> to vector<8x896xf32>
    %41 = vector.extract_strided_slice %0 {offsets = [0, 6], sizes = [8, 1], strides = [1, 1]} : vector<8x27xf32> to vector<8x1xf32>
    %42 = vector.broadcast %41 : vector<8x1xf32> to vector<8x896xf32>
    %43 = arith.mulf %40, %42 : vector<8x896xf32>
    %44 = arith.addf %37, %43 : vector<8x896xf32>
    %45 = vector.extract_strided_slice %39 {offsets = [0, 1], sizes = [8, 896], strides = [1, 1]} : vector<8x898xf32> to vector<8x896xf32>
    %46 = vector.extract_strided_slice %0 {offsets = [0, 7], sizes = [8, 1], strides = [1, 1]} : vector<8x27xf32> to vector<8x1xf32>
    %47 = vector.broadcast %46 : vector<8x1xf32> to vector<8x896xf32>
    %48 = arith.mulf %45, %47 : vector<8x896xf32>
    %49 = arith.addf %44, %48 : vector<8x896xf32>
    %50 = vector.extract_strided_slice %39 {offsets = [0, 2], sizes = [8, 896], strides = [1, 1]} : vector<8x898xf32> to vector<8x896xf32>
    %51 = vector.extract_strided_slice %0 {offsets = [0, 8], sizes = [8, 1], strides = [1, 1]} : vector<8x27xf32> to vector<8x1xf32>
    %52 = vector.broadcast %51 : vector<8x1xf32> to vector<8x896xf32>
    %53 = arith.mulf %50, %52 : vector<8x896xf32>
    %54 = arith.addf %49, %53 : vector<8x896xf32>
    %c0_12 = arith.constant 0 : index
    %c0_13 = arith.constant 0 : index
    %c100 = arith.constant 100 : index
    %55 = vector.load %arg1[%c0_12, %c0_13, %c100] : memref<1x8x1200xf32, #tpu.memory_space<vmem>>, vector<1x8x898xf32>
    %56 = vector.shape_cast %55 : vector<1x8x898xf32> to vector<8x898xf32>
    %57 = vector.extract_strided_slice %56 {offsets = [0, 0], sizes = [8, 896], strides = [1, 1]} : vector<8x898xf32> to vector<8x896xf32>
    %58 = vector.extract_strided_slice %0 {offsets = [0, 9], sizes = [8, 1], strides = [1, 1]} : vector<8x27xf32> to vector<8x1xf32>
    %59 = vector.broadcast %58 : vector<8x1xf32> to vector<8x896xf32>
    %60 = arith.mulf %57, %59 : vector<8x896xf32>
    %61 = arith.addf %54, %60 : vector<8x896xf32>
    %62 = vector.extract_strided_slice %56 {offsets = [0, 1], sizes = [8, 896], strides = [1, 1]} : vector<8x898xf32> to vector<8x896xf32>
    %63 = vector.extract_strided_slice %0 {offsets = [0, 10], sizes = [8, 1], strides = [1, 1]} : vector<8x27xf32> to vector<8x1xf32>
    %64 = vector.broadcast %63 : vector<8x1xf32> to vector<8x896xf32>
    %65 = arith.mulf %62, %64 : vector<8x896xf32>
    %66 = arith.addf %61, %65 : vector<8x896xf32>
    %67 = vector.extract_strided_slice %56 {offsets = [0, 2], sizes = [8, 896], strides = [1, 1]} : vector<8x898xf32> to vector<8x896xf32>
    %68 = vector.extract_strided_slice %0 {offsets = [0, 11], sizes = [8, 1], strides = [1, 1]} : vector<8x27xf32> to vector<8x1xf32>
    %69 = vector.broadcast %68 : vector<8x1xf32> to vector<8x896xf32>
    %70 = arith.mulf %67, %69 : vector<8x896xf32>
    %71 = arith.addf %66, %70 : vector<8x896xf32>
    %c0_14 = arith.constant 0 : index
    %c0_15 = arith.constant 0 : index
    %c110 = arith.constant 110 : index
    %72 = vector.load %arg1[%c0_14, %c0_15, %c110] : memref<1x8x1200xf32, #tpu.memory_space<vmem>>, vector<1x8x898xf32>
    %73 = vector.shape_cast %72 : vector<1x8x898xf32> to vector<8x898xf32>
    %74 = vector.extract_strided_slice %73 {offsets = [0, 0], sizes = [8, 896], strides = [1, 1]} : vector<8x898xf32> to vector<8x896xf32>
    %75 = vector.extract_strided_slice %0 {offsets = [0, 12], sizes = [8, 1], strides = [1, 1]} : vector<8x27xf32> to vector<8x1xf32>
    %76 = vector.broadcast %75 : vector<8x1xf32> to vector<8x896xf32>
    %77 = arith.mulf %74, %76 : vector<8x896xf32>
    %78 = arith.addf %71, %77 : vector<8x896xf32>
    %79 = vector.extract_strided_slice %73 {offsets = [0, 1], sizes = [8, 896], strides = [1, 1]} : vector<8x898xf32> to vector<8x896xf32>
    %80 = vector.extract_strided_slice %0 {offsets = [0, 13], sizes = [8, 1], strides = [1, 1]} : vector<8x27xf32> to vector<8x1xf32>
    %81 = vector.broadcast %80 : vector<8x1xf32> to vector<8x896xf32>
    %82 = arith.mulf %79, %81 : vector<8x896xf32>
    %83 = arith.addf %78, %82 : vector<8x896xf32>
    %84 = vector.extract_strided_slice %73 {offsets = [0, 2], sizes = [8, 896], strides = [1, 1]} : vector<8x898xf32> to vector<8x896xf32>
    %85 = vector.extract_strided_slice %0 {offsets = [0, 14], sizes = [8, 1], strides = [1, 1]} : vector<8x27xf32> to vector<8x1xf32>
    %86 = vector.broadcast %85 : vector<8x1xf32> to vector<8x896xf32>
    %87 = arith.mulf %84, %86 : vector<8x896xf32>
    %88 = arith.addf %83, %87 : vector<8x896xf32>
    %c0_16 = arith.constant 0 : index
    %c0_17 = arith.constant 0 : index
    %c120 = arith.constant 120 : index
    %89 = vector.load %arg1[%c0_16, %c0_17, %c120] : memref<1x8x1200xf32, #tpu.memory_space<vmem>>, vector<1x8x898xf32>
    %90 = vector.shape_cast %89 : vector<1x8x898xf32> to vector<8x898xf32>
    %91 = vector.extract_strided_slice %90 {offsets = [0, 0], sizes = [8, 896], strides = [1, 1]} : vector<8x898xf32> to vector<8x896xf32>
    %92 = vector.extract_strided_slice %0 {offsets = [0, 15], sizes = [8, 1], strides = [1, 1]} : vector<8x27xf32> to vector<8x1xf32>
    %93 = vector.broadcast %92 : vector<8x1xf32> to vector<8x896xf32>
    %94 = arith.mulf %91, %93 : vector<8x896xf32>
    %95 = arith.addf %88, %94 : vector<8x896xf32>
    %96 = vector.extract_strided_slice %90 {offsets = [0, 1], sizes = [8, 896], strides = [1, 1]} : vector<8x898xf32> to vector<8x896xf32>
    %97 = vector.extract_strided_slice %0 {offsets = [0, 16], sizes = [8, 1], strides = [1, 1]} : vector<8x27xf32> to vector<8x1xf32>
    %98 = vector.broadcast %97 : vector<8x1xf32> to vector<8x896xf32>
    %99 = arith.mulf %96, %98 : vector<8x896xf32>
    %100 = arith.addf %95, %99 : vector<8x896xf32>
    %101 = vector.extract_strided_slice %90 {offsets = [0, 2], sizes = [8, 896], strides = [1, 1]} : vector<8x898xf32> to vector<8x896xf32>
    %102 = vector.extract_strided_slice %0 {offsets = [0, 17], sizes = [8, 1], strides = [1, 1]} : vector<8x27xf32> to vector<8x1xf32>
    %103 = vector.broadcast %102 : vector<8x1xf32> to vector<8x896xf32>
    %104 = arith.mulf %101, %103 : vector<8x896xf32>
    %105 = arith.addf %100, %104 : vector<8x896xf32>
    %c0_18 = arith.constant 0 : index
    %c0_19 = arith.constant 0 : index
    %c200 = arith.constant 200 : index
    %106 = vector.load %arg1[%c0_18, %c0_19, %c200] : memref<1x8x1200xf32, #tpu.memory_space<vmem>>, vector<1x8x898xf32>
    %107 = vector.shape_cast %106 : vector<1x8x898xf32> to vector<8x898xf32>
    %108 = vector.extract_strided_slice %107 {offsets = [0, 0], sizes = [8, 896], strides = [1, 1]} : vector<8x898xf32> to vector<8x896xf32>
    %109 = vector.extract_strided_slice %0 {offsets = [0, 18], sizes = [8, 1], strides = [1, 1]} : vector<8x27xf32> to vector<8x1xf32>
    %110 = vector.broadcast %109 : vector<8x1xf32> to vector<8x896xf32>
    %111 = arith.mulf %108, %110 : vector<8x896xf32>
    %112 = arith.addf %105, %111 : vector<8x896xf32>
    %113 = vector.extract_strided_slice %107 {offsets = [0, 1], sizes = [8, 896], strides = [1, 1]} : vector<8x898xf32> to vector<8x896xf32>
    %114 = vector.extract_strided_slice %0 {offsets = [0, 19], sizes = [8, 1], strides = [1, 1]} : vector<8x27xf32> to vector<8x1xf32>
    %115 = vector.broadcast %114 : vector<8x1xf32> to vector<8x896xf32>
    %116 = arith.mulf %113, %115 : vector<8x896xf32>
    %117 = arith.addf %112, %116 : vector<8x896xf32>
    %118 = vector.extract_strided_slice %107 {offsets = [0, 2], sizes = [8, 896], strides = [1, 1]} : vector<8x898xf32> to vector<8x896xf32>
    %119 = vector.extract_strided_slice %0 {offsets = [0, 20], sizes = [8, 1], strides = [1, 1]} : vector<8x27xf32> to vector<8x1xf32>
    %120 = vector.broadcast %119 : vector<8x1xf32> to vector<8x896xf32>
    %121 = arith.mulf %118, %120 : vector<8x896xf32>
    %122 = arith.addf %117, %121 : vector<8x896xf32>
    %c0_20 = arith.constant 0 : index
    %c0_21 = arith.constant 0 : index
    %c210 = arith.constant 210 : index
    %123 = vector.load %arg1[%c0_20, %c0_21, %c210] : memref<1x8x1200xf32, #tpu.memory_space<vmem>>, vector<1x8x898xf32>
    %124 = vector.shape_cast %123 : vector<1x8x898xf32> to vector<8x898xf32>
    %125 = vector.extract_strided_slice %124 {offsets = [0, 0], sizes = [8, 896], strides = [1, 1]} : vector<8x898xf32> to vector<8x896xf32>
    %126 = vector.extract_strided_slice %0 {offsets = [0, 21], sizes = [8, 1], strides = [1, 1]} : vector<8x27xf32> to vector<8x1xf32>
    %127 = vector.broadcast %126 : vector<8x1xf32> to vector<8x896xf32>
    %128 = arith.mulf %125, %127 : vector<8x896xf32>
    %129 = arith.addf %122, %128 : vector<8x896xf32>
    %130 = vector.extract_strided_slice %124 {offsets = [0, 1], sizes = [8, 896], strides = [1, 1]} : vector<8x898xf32> to vector<8x896xf32>
    %131 = vector.extract_strided_slice %0 {offsets = [0, 22], sizes = [8, 1], strides = [1, 1]} : vector<8x27xf32> to vector<8x1xf32>
    %132 = vector.broadcast %131 : vector<8x1xf32> to vector<8x896xf32>
    %133 = arith.mulf %130, %132 : vector<8x896xf32>
    %134 = arith.addf %129, %133 : vector<8x896xf32>
    %135 = vector.extract_strided_slice %124 {offsets = [0, 2], sizes = [8, 896], strides = [1, 1]} : vector<8x898xf32> to vector<8x896xf32>
    %136 = vector.extract_strided_slice %0 {offsets = [0, 23], sizes = [8, 1], strides = [1, 1]} : vector<8x27xf32> to vector<8x1xf32>
    %137 = vector.broadcast %136 : vector<8x1xf32> to vector<8x896xf32>
    %138 = arith.mulf %135, %137 : vector<8x896xf32>
    %139 = arith.addf %134, %138 : vector<8x896xf32>
    %c0_22 = arith.constant 0 : index
    %c0_23 = arith.constant 0 : index
    %c220 = arith.constant 220 : index
    %140 = vector.load %arg1[%c0_22, %c0_23, %c220] : memref<1x8x1200xf32, #tpu.memory_space<vmem>>, vector<1x8x898xf32>
    %141 = vector.shape_cast %140 : vector<1x8x898xf32> to vector<8x898xf32>
    %142 = vector.extract_strided_slice %141 {offsets = [0, 0], sizes = [8, 896], strides = [1, 1]} : vector<8x898xf32> to vector<8x896xf32>
    %143 = vector.extract_strided_slice %0 {offsets = [0, 24], sizes = [8, 1], strides = [1, 1]} : vector<8x27xf32> to vector<8x1xf32>
    %144 = vector.broadcast %143 : vector<8x1xf32> to vector<8x896xf32>
    %145 = arith.mulf %142, %144 : vector<8x896xf32>
    %146 = arith.addf %139, %145 : vector<8x896xf32>
    %147 = vector.extract_strided_slice %141 {offsets = [0, 1], sizes = [8, 896], strides = [1, 1]} : vector<8x898xf32> to vector<8x896xf32>
    %148 = vector.extract_strided_slice %0 {offsets = [0, 25], sizes = [8, 1], strides = [1, 1]} : vector<8x27xf32> to vector<8x1xf32>
    %149 = vector.broadcast %148 : vector<8x1xf32> to vector<8x896xf32>
    %150 = arith.mulf %147, %149 : vector<8x896xf32>
    %151 = arith.addf %146, %150 : vector<8x896xf32>
    %152 = vector.extract_strided_slice %141 {offsets = [0, 2], sizes = [8, 896], strides = [1, 1]} : vector<8x898xf32> to vector<8x896xf32>
    %153 = vector.extract_strided_slice %0 {offsets = [0, 26], sizes = [8, 1], strides = [1, 1]} : vector<8x27xf32> to vector<8x1xf32>
    %154 = vector.broadcast %153 : vector<8x1xf32> to vector<8x896xf32>
    %155 = arith.mulf %152, %154 : vector<8x896xf32>
    %156 = arith.addf %151, %155 : vector<8x896xf32>
    %cst_24 = arith.constant dense<0.000000e+00> : vector<8x896xf32>
    %157 = tpu.matmul %1, %156, %cst_24 {dimension_numbers = #tpu.dot_dimension_numbers<[1], [0], [0], [1], [0, 0, 1, 1], [], []>} : vector<8x8xf32>, vector<8x896xf32>, vector<8x896xf32> -> vector<8x896xf32>
    %158 = vector.broadcast %2 : vector<8x1xf32> to vector<8x896xf32>
    %159 = arith.addf %157, %158 : vector<8x896xf32>
    %c0_25 = arith.constant 0 : index
    %c0_26 = arith.constant 0 : index
    %c0_27 = arith.constant 0 : index
    %160 = vector.load %arg5[%c0_25, %c0_26, %c0_27] : memref<1x8x896xf32, #tpu.memory_space<vmem>>, vector<1x8x896xf32>
    %161 = vector.shape_cast %160 : vector<1x8x896xf32> to vector<8x896xf32>
    %162 = vector.shape_cast %159 : vector<8x896xf32> to vector<1x8x896xf32>
    tpu.vector_store %arg5[%c0_25, %c0_26, %c0_27], %162 {strides = array<i32>} : memref<1x8x896xf32, #tpu.memory_space<vmem>>, vector<1x8x896xf32>,
    return
  }
  func.func @transform_0(%arg0: i32) -> (i32, i32, i32) {
    %c0_i32 = arith.constant 0 : i32
    %c0_i32_0 = arith.constant 0 : i32
    %c0_i32_1 = arith.constant 0 : i32
    return %arg0, %c0_i32, %c0_i32_0 : i32, i32, i32
  }
  func.func @transform_1(%arg0: i32) -> (i32, i32) {
    %c0_i32 = arith.constant 0 : i32
    %c0_i32_0 = arith.constant 0 : i32
    %c0_i32_1 = arith.constant 0 : i32
    return %c0_i32, %c0_i32_0 : i32, i32
  }
  func.func @transform_2(%arg0: i32) -> (i32, i32) {
    %c0_i32 = arith.constant 0 : i32
    %c0_i32_0 = arith.constant 0 : i32
    %c0_i32_1 = arith.constant 0 : i32
    return %c0_i32, %c0_i32_0 : i32, i32
  }
  func.func @transform_3(%arg0: i32) -> (i32, i32) {
    %c0_i32 = arith.constant 0 : i32
    %c0_i32_0 = arith.constant 0 : i32
    %c0_i32_1 = arith.constant 0 : i32
    return %c0_i32, %c0_i32_0 : i32, i32
  }
  func.func @transform_4(%arg0: i32) -> (i32, i32, i32) {
    %c0_i32 = arith.constant 0 : i32
    %c0_i32_0 = arith.constant 0 : i32
    %c0_i32_1 = arith.constant 0 : i32
    return %arg0, %c0_i32, %c0_i32_0 : i32, i32, i32
  }
}

</mosaic_0001>

<llo_original>
// kernel: tpu_custom_call.1
$region0: #{tpu_custom_call.1}
  #allocation0 [shape = 'u32[]', space=smem, size = 0x4, offset = 0x4, fixed_abs, tag = 'smem constant byte address 0x4 - core index']
  #allocation1 [shape = 'u32[144,128]{1,0:T(1,128)}', space=vmem, size = 0x12000, scoped, tag = 'internal scratch']
  %s0 = inlined_call_operand.hbm [shape: f32[2,8,1200], index: 0, kind: input, shape index: {}]
  %s1 = inlined_call_operand.vmem [shape: f32[8,27], index: 1, kind: input, shape index: {}]
  %s2 = inlined_call_operand.hbm [shape: f32[8,8], index: 2, kind: input, shape index: {}]
  %s3 = inlined_call_operand.vmem [shape: f32[8,1], index: 3, kind: input, shape index: {}]
  %s4 = inlined_call_operand.hbm [shape: f32[2,8,896], index: 4, kind: output, shape index: {}]
  %s5 = sld [smem:[#allocation0]]
  $region57: #{tpu_custom_call.1} parent=0
    _
  %s7 = ssub.s32 1, %s5
  %s8 = scalar_select 0, %s7, %s5
  $region1: #{tpu_custom_call.1} parent=0
    #allocation2 [shape = 'u8[81920]{0}', space=vmem, size = 0x14000, scoped, tag = 'input window, operand 0']
    #allocation3 [shape = 's32[2]{0}', space=sflag, size = 0x8, scoped, tag = 'scoped memory for tpu_custom_call.1']
    #allocation4 [shape = 's32[2]{0}', space=sflag, size = 0x8, scoped, tag = 'scoped memory for tpu_custom_call.1']
    #allocation5 [shape = 'u8[4096]{0}', space=vmem, size = 0x1000, scoped, tag = 'input window, operand 2, single buffered']
    #allocation6 [shape = 's32[1]{0}', space=sflag, size = 0x4, scoped, tag = 'scoped memory for tpu_custom_call.1']
    #allocation7 [shape = 'u8[57344]{0}', space=vmem, size = 0xe000, scoped, tag = 'output window, operand 0']
    %9 = vsyncpa [#allocation3], 0
    %s10 = scalar_lea.sflag [#allocation3], 1
    %11 = vsyncpa %s10, 0
    %12 = vsyncpa [#allocation6], 0
    %13 = vsyncpa [#allocation4], 0
    %s14 = scalar_lea.sflag [#allocation4], 1
    %15 = vsyncpa %s14, 0
    loop: start=0, step=1, limit=4
    $region2: #{tpu_custom_call.1} parent=1 // loop_pre_header
      _
    $region3: #{tpu_custom_call.1} parent=1 // loop_header
      %s17 = sphi 0, %s21
      %p18 = scmp.ge.s32.totalorder %s17, 4
      %s27 = sphi 0, %s29
      %s30 = sphi 0, %s27
      %s31 = sphi 0, %s30
      %s47 = sphi 0, %s31
      %s51 = sphi 0, %s51
      %s53 = sphi 0, %s51
      %s54 = sphi 0, %s53
      %s68 = sphi 0, %s54
      %s72 = sphi 0, %s72
      %s74 = sphi 0, %s72
      %s75 = sphi 0, %s74
      %s89 = sphi 0, %s75
      %s93 = sphi 0, %s93
      %s95 = sphi 0, %s93
      %s96 = sphi 0, %s95
      %s110 = sphi 0, %s96
      %s116 = sphi 0, %s118
      %s119 = sphi 0, %s116
      %s120 = sphi 0, %s119
      %s136 = sphi 0, %s120
    $region4: #{tpu_custom_call.1} parent=1 // loop_header_branch
      %20 = sbr.rel (%p18) target = $region8
    $region5: #{tpu_custom_call.1} parent=1 // loop_body
      %s22 = ssub.s32 %s17, 1
      %s23 = ssub.s32 %s17, 2
      %s24 = sadd.s32 %s17, 1
      %s25 = ssub.s32 %s17, %s24
      %p26 = scmp.eq.s32.totalorder %s25, 0
      %s28 = sadd.s32 %s27, 1
      %s29 = scalar_select %p26, %s27, %s28
      %p32 = pneg %p26
      %p33 = scmp.eq.s32.totalorder %s17, 1
      %p34 = por %p32, %p33
      %p35 = scmp.ne.s32.totalorder %s27, %s30
      %p36 = scmp.eq.s32.totalorder %s17, 0
      %p37 = por %p35, %p36
      %p38 = scmp.ne.s32.totalorder %s27, %s30
      %p39 = scmp.eq.s32.totalorder %s22, 1
      %p40 = por %p38, %p39
      %p41 = scmp.ne.s32.totalorder %s30, %s31
      %p42 = scmp.eq.s32.totalorder %s22, 0
      %p43 = por %p41, %p42
      %p44 = scmp.ne.s32.totalorder %s30, %s31
      %p45 = scmp.eq.s32.totalorder %s23, 1
      %p46 = por %p44, %p45
      %p48 = scmp.ne.s32.totalorder %s31, %s47
      %p49 = scmp.eq.s32.totalorder %s23, 0
      %p50 = por %p48, %p49
      %s52 = sadd.s32 %s51, 1
      %p55 = scmp.eq.s32.totalorder %s17, 1
      %p56 = scmp.ne.s32.totalorder %s51, %s53
      %p57 = scmp.eq.s32.totalorder %s17, 0
      %p58 = por %p56, %p57
      %p59 = scmp.ne.s32.totalorder %s51, %s53
      %p60 = scmp.eq.s32.totalorder %s22, 1
      %p61 = por %p59, %p60
      %p62 = scmp.ne.s32.totalorder %s53, %s54
      %p63 = scmp.eq.s32.totalorder %s22, 0
      %p64 = por %p62, %p63
      %p65 = scmp.ne.s32.totalorder %s53, %s54
      %p66 = scmp.eq.s32.totalorder %s23, 1
      %p67 = por %p65, %p66
      %p69 = scmp.ne.s32.totalorder %s54, %s68
      %p70 = scmp.eq.s32.totalorder %s23, 0
      %p71 = por %p69, %p70
      %s73 = sadd.s32 %s72, 1
      %p76 = scmp.eq.s32.totalorder %s17, 1
      %p77 = scmp.ne.s32.totalorder %s72, %s74
      %p78 = scmp.eq.s32.totalorder %s17, 0
      %p79 = por %p77, %p78
      %p80 = scmp.ne.s32.totalorder %s72, %s74
      %p81 = scmp.eq.s32.totalorder %s22, 1
      %p82 = por %p80, %p81
      %p83 = scmp.ne.s32.totalorder %s74, %s75
      %p84 = scmp.eq.s32.totalorder %s22, 0
      %p85 = por %p83, %p84
      %p86 = scmp.ne.s32.totalorder %s74, %s75
      %p87 = scmp.eq.s32.totalorder %s23, 1
      %p88 = por %p86, %p87
      %p90 = scmp.ne.s32.totalorder %s75, %s89
      %p91 = scmp.eq.s32.totalorder %s23, 0
      %p92 = por %p90, %p91
      %s94 = sadd.s32 %s93, 1
      %p97 = scmp.eq.s32.totalorder %s17, 1
      %p98 = scmp.ne.s32.totalorder %s93, %s95
      %p99 = scmp.eq.s32.totalorder %s17, 0
      %p100 = por %p98, %p99
      %p101 = scmp.ne.s32.totalorder %s93, %s95
      %p102 = scmp.eq.s32.totalorder %s22, 1
      %p103 = por %p101, %p102
      %p104 = scmp.ne.s32.totalorder %s95, %s96
      %p105 = scmp.eq.s32.totalorder %s22, 0
      %p106 = por %p104, %p105
      %p107 = scmp.ne.s32.totalorder %s95, %s96
      %p108 = scmp.eq.s32.totalorder %s23, 1
      %p109 = por %p107, %p108
      %p111 = scmp.ne.s32.totalorder %s96, %s110
      %p112 = scmp.eq.s32.totalorder %s23, 0
      %p113 = por %p111, %p112
      %s114 = ssub.s32 %s17, %s24
      %p115 = scmp.eq.s32.totalorder %s114, 0
      %s117 = sadd.s32 %s116, 1
      %s118 = scalar_select %p115, %s116, %s117
      %p121 = pneg %p115
      %p122 = scmp.eq.s32.totalorder %s17, 1
      %p123 = por %p121, %p122
      %p124 = scmp.ne.s32.totalorder %s116, %s119
      %p125 = scmp.eq.s32.totalorder %s17, 0
      %p126 = por %p124, %p125
      %p127 = scmp.ne.s32.totalorder %s116, %s119
      %p128 = scmp.eq.s32.totalorder %s22, 1
      %p129 = por %p127, %p128
      %p130 = scmp.ne.s32.totalorder %s119, %s120
      %p131 = scmp.eq.s32.totalorder %s22, 0
      %p132 = por %p130, %p131
      %p133 = scmp.ne.s32.totalorder %s119, %s120
      %p134 = scmp.eq.s32.totalorder %s23, 1
      %p135 = por %p133, %p134
      %p137 = scmp.ne.s32.totalorder %s120, %s136
      %p138 = scmp.eq.s32.totalorder %s23, 0
      %p139 = por %p137, %p138
      %p140 = scmp.le.s32.totalorder 1, %s17
      %p141 = scmp.lt.s32.totalorder %s17, 3
      %p142 = pnand %p140, %p141
      %p143 = pneg %p142
      // Predicated region
      $region9: #{tpu_custom_call.1} parent=5 // pred_check
        _
      $region10: #{tpu_custom_call.1} parent=5 // pred_check_branch
        %145 = sbr.rel (%p142) target = $region12
      $region11: #{tpu_custom_call.1} parent=5 // pred_region
        %s146 = ssub.s32 %s17, 1
        // Predicated region
        $region13: #{tpu_custom_call.1} parent=11 // pred_check
          %p147 = pneg %p64
        $region14: #{tpu_custom_call.1} parent=11 // pred_check_branch
          %149 = sbr.rel (%p147) target = $region16
        $region15: #{tpu_custom_call.1} parent=11 // pred_region
          _
        $region16: #{tpu_custom_call.1} parent=11 // pred_fallthru
          _
        // Predicated region
        $region17: #{tpu_custom_call.1} parent=11 // pred_check
          %p150 = pneg %p85
        $region18: #{tpu_custom_call.1} parent=11 // pred_check_branch
          %152 = sbr.rel (%p150) target = $region20
        $region19: #{tpu_custom_call.1} parent=11 // pred_region
          %s154 = ssub.s32 128, 128
          %155 = vsyncadd [#allocation6], %s154
          %s157 = sshll.u32 [#allocation5], 4
          %s158 = int_to_ptr.vmem [resolvable:$true] %s157
          %160 = dma.hbm_to_vmem [thread:$0]  %s2, 128, %s158, [#allocation6]
        $region20: #{tpu_custom_call.1} parent=11 // pred_fallthru
          _
        // Predicated region
        $region21: #{tpu_custom_call.1} parent=11 // pred_check
          %p161 = pneg %p106
        $region22: #{tpu_custom_call.1} parent=11 // pred_check_branch
          %163 = sbr.rel (%p161) target = $region24
        $region23: #{tpu_custom_call.1} parent=11 // pred_region
          _
        $region24: #{tpu_custom_call.1} parent=11 // pred_fallthru
          _
      $region12: #{tpu_custom_call.1} parent=5 // pred_fallthru
        _
      %p164 = scmp.lt.s32.totalorder %s17, 2
      // Predicated region
      $region25: #{tpu_custom_call.1} parent=5 // pred_check
        %p165 = pneg %p164
      $region26: #{tpu_custom_call.1} parent=5 // pred_check_branch
        %167 = sbr.rel (%p165) target = $region28
      $region27: #{tpu_custom_call.1} parent=5 // pred_region
        // Predicated region
        $region29: #{tpu_custom_call.1} parent=27 // pred_check
          %p168 = pneg %p37
        $region30: #{tpu_custom_call.1} parent=27 // pred_check_branch
          %170 = sbr.rel (%p168) target = $region32
        $region31: #{tpu_custom_call.1} parent=27 // pred_region
          %s171 = sand.u32 %s27, 1
          %s172 = scalar_lea.sflag [#allocation3], %s171
          %s173 = sand.u32 %s27, 1
          %s174 = smul.addr %s173, 80
          %s175 = scalar_lea.vmem [#allocation2], %s174
          %s177 = ssub.s32 1280, 1280
          %178 = vsyncadd %s172, %s177
          %s179 = smul.addr %s17, 10
          %s180 = smul.addr %s179, 128
          %s181 = scalar_lea.hbm %s0, %s180
          %s183 = sshll.u32 %s175, 4
          %s184 = int_to_ptr.vmem [resolvable:$true] %s183
          %186 = dma.hbm_to_vmem [thread:$0]  %s181, 1280, %s184, %s172
        $region32: #{tpu_custom_call.1} parent=27 // pred_fallthru
          _
      $region28: #{tpu_custom_call.1} parent=5 // pred_fallthru
        _
      %p187 = scmp.le.s32.totalorder 1, %s17
      %p188 = scmp.lt.s32.totalorder %s17, 3
      %p189 = pnand %p187, %p188
      %p190 = pneg %p189
      // Predicated region
      $region33: #{tpu_custom_call.1} parent=5 // pred_check
        _
      $region34: #{tpu_custom_call.1} parent=5 // pred_check_branch
        %192 = sbr.rel (%p189) target = $region36
      $region35: #{tpu_custom_call.1} parent=5 // pred_region
        %s193 = ssub.s32 %s17, 1
        %s194 = sand.u32 %s30, 1
        %s195 = scalar_lea.sflag [#allocation3], %s194
        %s196 = sand.u32 %s30, 1
        %s197 = smul.addr %s196, 80
        %s198 = scalar_lea.vmem [#allocation2], %s197
        // Predicated region
        $region37: #{tpu_custom_call.1} parent=35 // pred_check
          %p199 = pneg %p43
        $region38: #{tpu_custom_call.1} parent=35 // pred_check_branch
          %201 = sbr.rel (%p199) target = $region40
        $region39: #{tpu_custom_call.1} parent=35 // pred_region
          %202 = dma.done %s195, 1280
        $region40: #{tpu_custom_call.1} parent=35 // pred_fallthru
          _
        // Predicated region
        $region41: #{tpu_custom_call.1} parent=35 // pred_check
          %p203 = pneg %p85
        $region42: #{tpu_custom_call.1} parent=35 // pred_check_branch
          %205 = sbr.rel (%p203) target = $region44
        $region43: #{tpu_custom_call.1} parent=35 // pred_region
          %206 = dma.done [#allocation6], 128
        $region44: #{tpu_custom_call.1} parent=35 // pred_fallthru
          _
        %s207 = sand.u32 %s30, 1
        %s208 = scalar_lea.sflag [#allocation3], %s207
        %s209 = sand.u32 %s30, 1
        %s210 = smul.addr %s209, 80
        %s211 = scalar_lea.vmem [#allocation2], %s210
        %p212 = pneg %p43
        %p213 = pneg %p40
        %p214 = pneg %p64
        %p215 = pneg %p61
        %p216 = pneg %p85
        %p217 = pneg %p82
        %p218 = pneg %p106
        %p219 = pneg %p103
        %p220 = pneg %p132
        %p221 = pneg %p129
        %s222 = sand.u32 %s119, 1
        %s223 = scalar_lea.sflag [#allocation4], %s222
        %s224 = sand.u32 %s119, 1
        %s225 = smul.addr %s224, 56
        %s226 = scalar_lea.vmem [#allocation7], %s225
        %v227 = vld [vmem:[%s1] sm:$0xff]
        %v228 = vld [vmem:[#allocation5] sm:$0xff]
        %v229 = vld [vmem:[%s3] sm:$0xff]
        %v230 = vld [vmem:[%s198] sm:$0xff]
        %v231 = vld [vmem:[%s198 + $0x8] sm:$0xff]
        %v232 = vld [vmem:[%s198 + $0x10] sm:$0xff]
        %v233 = vld [vmem:[%s198 + $0x18] sm:$0xff]
        %v234 = vld [vmem:[%s198 + $0x20] sm:$0xff]
        %v235 = vld [vmem:[%s198 + $0x28] sm:$0xff]
        %v236 = vld [vmem:[%s198 + $0x30] sm:$0xff]
        %v237 = vld [vmem:[%s198 + $0x38] sm:$0xff]
        %239 = vset.pattern.permute.xlu0 0
        %240 = vperm.xlu0 %239, %v227
        %v241 = vpop.permute.xlu0 %240
        %v243 = vmul.f32 %v230, %v241
        %v244 = vmul.f32 %v231, %v241
        %v245 = vmul.f32 %v232, %v241
        %v246 = vmul.f32 %v233, %v241
        %v247 = vmul.f32 %v234, %v241
        %v248 = vmul.f32 %v235, %v241
        %v249 = vmul.f32 %v236, %v241
        %v250 = vadd.f32 %v243, 0.0
        %v251 = vadd.f32 %v244, 0.0
        %v252 = vadd.f32 %v245, 0.0
        %v253 = vadd.f32 %v246, 0.0
        %v254 = vadd.f32 %v247, 0.0
        %v255 = vadd.f32 %v248, 0.0
        %v256 = vadd.f32 %v249, 0.0
        %257 = vset.pattern.permute.xlu0 1
        %258 = vperm.xlu0 %257, %v227
        %v259 = vpop.permute.xlu0 %258
        %v261 = vmul.f32 %v230, %v259
        %v262 = vmul.f32 %v231, %v259
        %v263 = vmul.f32 %v232, %v259
        %v264 = vmul.f32 %v233, %v259
        %v265 = vmul.f32 %v234, %v259
        %v266 = vmul.f32 %v235, %v259
        %v267 = vmul.f32 %v236, %v259
        %v268 = vmul.f32 %v237, %v259
        %277 = vrot.lane.b32.xlu0 %v261, 127
        %v278 = vpop.permute.xlu0 %277
        %279 = vrot.lane.b32.xlu0 %v262, 127
        %v280 = vpop.permute.xlu0 %279
        %281 = vrot.lane.b32.xlu0 %v263, 127
        %v282 = vpop.permute.xlu0 %281
        %283 = vrot.lane.b32.xlu0 %v264, 127
        %v284 = vpop.permute.xlu0 %283
        %285 = vrot.lane.b32.xlu0 %v265, 127
        %v286 = vpop.permute.xlu0 %285
        %287 = vrot.lane.b32.xlu0 %v266, 127
        %v288 = vpop.permute.xlu0 %287
        %289 = vrot.lane.b32.xlu0 %v267, 127
        %v290 = vpop.permute.xlu0 %289
        %291 = vrot.lane.b32.xlu0 %v268, 127
        %v292 = vpop.permute.xlu0 %291
        %vm293 = vcmask 1039360
        %v294 = vsel %vm293, %v278, %v280
        %v295 = vsel %vm293, %v280, %v282
        %v296 = vsel %vm293, %v282, %v284
        %v297 = vsel %vm293, %v284, %v286
        %v298 = vsel %vm293, %v286, %v288
        %v299 = vsel %vm293, %v288, %v290
        %v300 = vsel %vm293, %v290, %v292
        %v308 = vadd.f32 %v250, %v294
        %v309 = vadd.f32 %v251, %v295
        %v310 = vadd.f32 %v252, %v296
        %v311 = vadd.f32 %v253, %v297
        %v312 = vadd.f32 %v254, %v298
        %v313 = vadd.f32 %v255, %v299
        %v314 = vadd.f32 %v256, %v300
        %315 = vset.pattern.permute.xlu0 2
        %316 = vperm.xlu0 %315, %v227
        %v317 = vpop.permute.xlu0 %316
        %v319 = vmul.f32 %v230, %v317
        %v320 = vmul.f32 %v231, %v317
        %v321 = vmul.f32 %v232, %v317
        %v322 = vmul.f32 %v233, %v317
        %v323 = vmul.f32 %v234, %v317
        %v324 = vmul.f32 %v235, %v317
        %v325 = vmul.f32 %v236, %v317
        %v326 = vmul.f32 %v237, %v317
        %335 = vrot.lane.b32.xlu0 %v319, 126
        %v336 = vpop.permute.xlu0 %335
        %337 = vrot.lane.b32.xlu0 %v320, 126
        %v338 = vpop.permute.xlu0 %337
        %339 = vrot.lane.b32.xlu0 %v321, 126
        %v340 = vpop.permute.xlu0 %339
        %341 = vrot.lane.b32.xlu0 %v322, 126
        %v342 = vpop.permute.xlu0 %341
        %343 = vrot.lane.b32.xlu0 %v323, 126
        %v344 = vpop.permute.xlu0 %343
        %345 = vrot.lane.b32.xlu0 %v324, 126
        %v346 = vpop.permute.xlu0 %345
        %347 = vrot.lane.b32.xlu0 %v325, 126
        %v348 = vpop.permute.xlu0 %347
        %349 = vrot.lane.b32.xlu0 %v326, 126
        %v350 = vpop.permute.xlu0 %349
        %vm351 = vcmask 1031168
        %v352 = vsel %vm351, %v336, %v338
        %v353 = vsel %vm351, %v338, %v340
        %v354 = vsel %vm351, %v340, %v342
        %v355 = vsel %vm351, %v342, %v344
        %v356 = vsel %vm351, %v344, %v346
        %v357 = vsel %vm351, %v346, %v348
        %v358 = vsel %vm351, %v348, %v350
        %v366 = vadd.f32 %v308, %v352
        %v367 = vadd.f32 %v309, %v353
        %v368 = vadd.f32 %v310, %v354
        %v369 = vadd.f32 %v311, %v355
        %v370 = vadd.f32 %v312, %v356
        %v371 = vadd.f32 %v313, %v357
        %v372 = vadd.f32 %v314, %v358
        %373 = vset.pattern.permute.xlu0 3
        %374 = vperm.xlu0 %373, %v227
        %v375 = vpop.permute.xlu0 %374
        %v377 = vmul.f32 %v230, %v375
        %v378 = vmul.f32 %v231, %v375
        %v379 = vmul.f32 %v232, %v375
        %v380 = vmul.f32 %v233, %v375
        %v381 = vmul.f32 %v234, %v375
        %v382 = vmul.f32 %v235, %v375
        %v383 = vmul.f32 %v236, %v375
        %v384 = vmul.f32 %v237, %v375
        %393 = vrot.lane.b32.xlu0 %v377, 118
        %v394 = vpop.permute.xlu0 %393
        %395 = vrot.lane.b32.xlu0 %v378, 118
        %v396 = vpop.permute.xlu0 %395
        %397 = vrot.lane.b32.xlu0 %v379, 118
        %v398 = vpop.permute.xlu0 %397
        %399 = vrot.lane.b32.xlu0 %v380, 118
        %v400 = vpop.permute.xlu0 %399
        %401 = vrot.lane.b32.xlu0 %v381, 118
        %v402 = vpop.permute.xlu0 %401
        %403 = vrot.lane.b32.xlu0 %v382, 118
        %v404 = vpop.permute.xlu0 %403
        %405 = vrot.lane.b32.xlu0 %v383, 118
        %v406 = vpop.permute.xlu0 %405
        %407 = vrot.lane.b32.xlu0 %v384, 118
        %v408 = vpop.permute.xlu0 %407
        %vm409 = vcmask 965632
        %v410 = vsel %vm409, %v394, %v396
        %v411 = vsel %vm409, %v396, %v398
        %v412 = vsel %vm409, %v398, %v400
        %v413 = vsel %vm409, %v400, %v402
        %v414 = vsel %vm409, %v402, %v404
        %v415 = vsel %vm409, %v404, %v406
        %v416 = vsel %vm409, %v406, %v408
        %v424 = vadd.f32 %v366, %v410
        %v425 = vadd.f32 %v367, %v411
        %v426 = vadd.f32 %v368, %v412
        %v427 = vadd.f32 %v369, %v413
        %v428 = vadd.f32 %v370, %v414
        %v429 = vadd.f32 %v371, %v415
        %v430 = vadd.f32 %v372, %v416
        %431 = vset.pattern.permute.xlu0 4
        %432 = vperm.xlu0 %431, %v227
        %v433 = vpop.permute.xlu0 %432
        %v435 = vmul.f32 %v230, %v433
        %v436 = vmul.f32 %v231, %v433
        %v437 = vmul.f32 %v232, %v433
        %v438 = vmul.f32 %v233, %v433
        %v439 = vmul.f32 %v234, %v433
        %v440 = vmul.f32 %v235, %v433
        %v441 = vmul.f32 %v236, %v433
        %v442 = vmul.f32 %v237, %v433
        %451 = vrot.lane.b32.xlu0 %v435, 117
        %v452 = vpop.permute.xlu0 %451
        %453 = vrot.lane.b32.xlu0 %v436, 117
        %v454 = vpop.permute.xlu0 %453
        %455 = vrot.lane.b32.xlu0 %v437, 117
        %v456 = vpop.permute.xlu0 %455
        %457 = vrot.lane.b32.xlu0 %v438, 117
        %v458 = vpop.permute.xlu0 %457
        %459 = vrot.lane.b32.xlu0 %v439, 117
        %v460 = vpop.permute.xlu0 %459
        %461 = vrot.lane.b32.xlu0 %v440, 117
        %v462 = vpop.permute.xlu0 %461
        %463 = vrot.lane.b32.xlu0 %v441, 117
        %v464 = vpop.permute.xlu0 %463
        %465 = vrot.lane.b32.xlu0 %v442, 117
        %v466 = vpop.permute.xlu0 %465
        %vm467 = vcmask 957440
        %v468 = vsel %vm467, %v452, %v454
        %v469 = vsel %vm467, %v454, %v456
        %v470 = vsel %vm467, %v456, %v458
        %v471 = vsel %vm467, %v458, %v460
        %v472 = vsel %vm467, %v460, %v462
        %v473 = vsel %vm467, %v462, %v464
        %v474 = vsel %vm467, %v464, %v466
        %v482 = vadd.f32 %v424, %v468
        %v483 = vadd.f32 %v425, %v469
        %v484 = vadd.f32 %v426, %v470
        %v485 = vadd.f32 %v427, %v471
        %v486 = vadd.f32 %v428, %v472
        %v487 = vadd.f32 %v429, %v473
        %v488 = vadd.f32 %v430, %v474
        %489 = vset.pattern.permute.xlu0 5
        %490 = vperm.xlu0 %489, %v227
        %v491 = vpop.permute.xlu0 %490
        %v493 = vmul.f32 %v230, %v491
        %v494 = vmul.f32 %v231, %v491
        %v495 = vmul.f32 %v232, %v491
        %v496 = vmul.f32 %v233, %v491
        %v497 = vmul.f32 %v234, %v491
        %v498 = vmul.f32 %v235, %v491
        %v499 = vmul.f32 %v236, %v491
        %v500 = vmul.f32 %v237, %v491
        %509 = vrot.lane.b32.xlu0 %v493, 116
        %v510 = vpop.permute.xlu0 %509
        %511 = vrot.lane.b32.xlu0 %v494, 116
        %v512 = vpop.permute.xlu0 %511
        %513 = vrot.lane.b32.xlu0 %v495, 116
        %v514 = vpop.permute.xlu0 %513
        %515 = vrot.lane.b32.xlu0 %v496, 116
        %v516 = vpop.permute.xlu0 %515
        %517 = vrot.lane.b32.xlu0 %v497, 116
        %v518 = vpop.permute.xlu0 %517
        %519 = vrot.lane.b32.xlu0 %v498, 116
        %v520 = vpop.permute.xlu0 %519
        %521 = vrot.lane.b32.xlu0 %v499, 116
        %v522 = vpop.permute.xlu0 %521
        %523 = vrot.lane.b32.xlu0 %v500, 116
        %v524 = vpop.permute.xlu0 %523
        %vm525 = vcmask 949248
        %v526 = vsel %vm525, %v510, %v512
        %v527 = vsel %vm525, %v512, %v514
        %v528 = vsel %vm525, %v514, %v516
        %v529 = vsel %vm525, %v516, %v518
        %v530 = vsel %vm525, %v518, %v520
        %v531 = vsel %vm525, %v520, %v522
        %v532 = vsel %vm525, %v522, %v524
        %v540 = vadd.f32 %v482, %v526
        %v541 = vadd.f32 %v483, %v527
        %v542 = vadd.f32 %v484, %v528
        %v543 = vadd.f32 %v485, %v529
        %v544 = vadd.f32 %v486, %v530
        %v545 = vadd.f32 %v487, %v531
        %v546 = vadd.f32 %v488, %v532
        %547 = vset.pattern.permute.xlu0 6
        %548 = vperm.xlu0 %547, %v227
        %v549 = vpop.permute.xlu0 %548
        %v551 = vmul.f32 %v230, %v549
        %v552 = vmul.f32 %v231, %v549
        %v553 = vmul.f32 %v232, %v549
        %v554 = vmul.f32 %v233, %v549
        %v555 = vmul.f32 %v234, %v549
        %v556 = vmul.f32 %v235, %v549
        %v557 = vmul.f32 %v236, %v549
        %v558 = vmul.f32 %v237, %v549
        %567 = vrot.lane.b32.xlu0 %v551, 108
        %v568 = vpop.permute.xlu0 %567
        %569 = vrot.lane.b32.xlu0 %v552, 108
        %v570 = vpop.permute.xlu0 %569
        %571 = vrot.lane.b32.xlu0 %v553, 108
        %v572 = vpop.permute.xlu0 %571
        %573 = vrot.lane.b32.xlu0 %v554, 108
        %v574 = vpop.permute.xlu0 %573
        %575 = vrot.lane.b32.xlu0 %v555, 108
        %v576 = vpop.permute.xlu0 %575
        %577 = vrot.lane.b32.xlu0 %v556, 108
        %v578 = vpop.permute.xlu0 %577
        %579 = vrot.lane.b32.xlu0 %v557, 108
        %v580 = vpop.permute.xlu0 %579
        %581 = vrot.lane.b32.xlu0 %v558, 108
        %v582 = vpop.permute.xlu0 %581
        %vm583 = vcmask 883712
        %v584 = vsel %vm583, %v568, %v570
        %v585 = vsel %vm583, %v570, %v572
        %v586 = vsel %vm583, %v572, %v574
        %v587 = vsel %vm583, %v574, %v576
        %v588 = vsel %vm583, %v576, %v578
        %v589 = vsel %vm583, %v578, %v580
        %v590 = vsel %vm583, %v580, %v582
        %v598 = vadd.f32 %v540, %v584
        %v599 = vadd.f32 %v541, %v585
        %v600 = vadd.f32 %v542, %v586
        %v601 = vadd.f32 %v543, %v587
        %v602 = vadd.f32 %v544, %v588
        %v603 = vadd.f32 %v545, %v589
        %v604 = vadd.f32 %v546, %v590
        %605 = vset.pattern.permute.xlu0 7
        %606 = vperm.xlu0 %605, %v227
        %v607 = vpop.permute.xlu0 %606
        %v609 = vmul.f32 %v230, %v607
        %v610 = vmul.f32 %v231, %v607
        %v611 = vmul.f32 %v232, %v607
        %v612 = vmul.f32 %v233, %v607
        %v613 = vmul.f32 %v234, %v607
        %v614 = vmul.f32 %v235, %v607
        %v615 = vmul.f32 %v236, %v607
        %v616 = vmul.f32 %v237, %v607
        %625 = vrot.lane.b32.xlu0 %v609, 107
        %v626 = vpop.permute.xlu0 %625
        %627 = vrot.lane.b32.xlu0 %v610, 107
        %v628 = vpop.permute.xlu0 %627
        %629 = vrot.lane.b32.xlu0 %v611, 107
        %v630 = vpop.permute.xlu0 %629
        %631 = vrot.lane.b32.xlu0 %v612, 107
        %v632 = vpop.permute.xlu0 %631
        %633 = vrot.lane.b32.xlu0 %v613, 107
        %v634 = vpop.permute.xlu0 %633
        %635 = vrot.lane.b32.xlu0 %v614, 107
        %v636 = vpop.permute.xlu0 %635
        %637 = vrot.lane.b32.xlu0 %v615, 107
        %v638 = vpop.permute.xlu0 %637
        %639 = vrot.lane.b32.xlu0 %v616, 107
        %v640 = vpop.permute.xlu0 %639
        %vm641 = vcmask 875520
        %v642 = vsel %vm641, %v626, %v628
        %v643 = vsel %vm641, %v628, %v630
        %v644 = vsel %vm641, %v630, %v632
        %v645 = vsel %vm641, %v632, %v634
        %v646 = vsel %vm641, %v634, %v636
        %v647 = vsel %vm641, %v636, %v638
        %v648 = vsel %vm641, %v638, %v640
        %v656 = vadd.f32 %v598, %v642
        %v657 = vadd.f32 %v599, %v643
        %v658 = vadd.f32 %v600, %v644
        %v659 = vadd.f32 %v601, %v645
        %v660 = vadd.f32 %v602, %v646
        %v661 = vadd.f32 %v603, %v647
        %v662 = vadd.f32 %v604, %v648
        %663 = vset.pattern.permute.xlu0 8
        %664 = vperm.xlu0 %663, %v227
        %v665 = vpop.permute.xlu0 %664
        %v667 = vmul.f32 %v230, %v665
        %v668 = vmul.f32 %v231, %v665
        %v669 = vmul.f32 %v232, %v665
        %v670 = vmul.f32 %v233, %v665
        %v671 = vmul.f32 %v234, %v665
        %v672 = vmul.f32 %v235, %v665
        %v673 = vmul.f32 %v236, %v665
        %v674 = vmul.f32 %v237, %v665
        %683 = vrot.lane.b32.xlu0 %v667, 106
        %v684 = vpop.permute.xlu0 %683
        %685 = vrot.lane.b32.xlu0 %v668, 106
        %v686 = vpop.permute.xlu0 %685
        %687 = vrot.lane.b32.xlu0 %v669, 106
        %v688 = vpop.permute.xlu0 %687
        %689 = vrot.lane.b32.xlu0 %v670, 106
        %v690 = vpop.permute.xlu0 %689
        %691 = vrot.lane.b32.xlu0 %v671, 106
        %v692 = vpop.permute.xlu0 %691
        %693 = vrot.lane.b32.xlu0 %v672, 106
        %v694 = vpop.permute.xlu0 %693
        %695 = vrot.lane.b32.xlu0 %v673, 106
        %v696 = vpop.permute.xlu0 %695
        %697 = vrot.lane.b32.xlu0 %v674, 106
        %v698 = vpop.permute.xlu0 %697
        %vm699 = vcmask 867328
        %v700 = vsel %vm699, %v684, %v686
        %v701 = vsel %vm699, %v686, %v688
        %v702 = vsel %vm699, %v688, %v690
        %v703 = vsel %vm699, %v690, %v692
        %v704 = vsel %vm699, %v692, %v694
        %v705 = vsel %vm699, %v694, %v696
        %v706 = vsel %vm699, %v696, %v698
        %v714 = vadd.f32 %v656, %v700
        %v715 = vadd.f32 %v657, %v701
        %v716 = vadd.f32 %v658, %v702
        %v717 = vadd.f32 %v659, %v703
        %v718 = vadd.f32 %v660, %v704
        %v719 = vadd.f32 %v661, %v705
        %v720 = vadd.f32 %v662, %v706
        %721 = vset.pattern.permute.xlu0 9
        %722 = vperm.xlu0 %721, %v227
        %v723 = vpop.permute.xlu0 %722
        %v725 = vmul.f32 %v230, %v723
        %v726 = vmul.f32 %v231, %v723
        %v727 = vmul.f32 %v232, %v723
        %v728 = vmul.f32 %v233, %v723
        %v729 = vmul.f32 %v234, %v723
        %v730 = vmul.f32 %v235, %v723
        %v731 = vmul.f32 %v236, %v723
        %v732 = vmul.f32 %v237, %v723
        %741 = vrot.lane.b32.xlu0 %v725, 28
        %v742 = vpop.permute.xlu0 %741
        %743 = vrot.lane.b32.xlu0 %v726, 28
        %v744 = vpop.permute.xlu0 %743
        %745 = vrot.lane.b32.xlu0 %v727, 28
        %v746 = vpop.permute.xlu0 %745
        %747 = vrot.lane.b32.xlu0 %v728, 28
        %v748 = vpop.permute.xlu0 %747
        %749 = vrot.lane.b32.xlu0 %v729, 28
        %v750 = vpop.permute.xlu0 %749
        %751 = vrot.lane.b32.xlu0 %v730, 28
        %v752 = vpop.permute.xlu0 %751
        %753 = vrot.lane.b32.xlu0 %v731, 28
        %v754 = vpop.permute.xlu0 %753
        %755 = vrot.lane.b32.xlu0 %v732, 28
        %v756 = vpop.permute.xlu0 %755
        %vm757 = vcmask 228352
        %v758 = vsel %vm757, %v742, %v744
        %v759 = vsel %vm757, %v744, %v746
        %v760 = vsel %vm757, %v746, %v748
        %v761 = vsel %vm757, %v748, %v750
        %v762 = vsel %vm757, %v750, %v752
        %v763 = vsel %vm757, %v752, %v754
        %v764 = vsel %vm757, %v754, %v756
        %v772 = vadd.f32 %v714, %v758
        %v773 = vadd.f32 %v715, %v759
        %v774 = vadd.f32 %v716, %v760
        %v775 = vadd.f32 %v717, %v761
        %v776 = vadd.f32 %v718, %v762
        %v777 = vadd.f32 %v719, %v763
        %v778 = vadd.f32 %v720, %v764
        %779 = vset.pattern.permute.xlu0 10
        %780 = vperm.xlu0 %779, %v227
        %v781 = vpop.permute.xlu0 %780
        %v783 = vmul.f32 %v230, %v781
        %v784 = vmul.f32 %v231, %v781
        %v785 = vmul.f32 %v232, %v781
        %v786 = vmul.f32 %v233, %v781
        %v787 = vmul.f32 %v234, %v781
        %v788 = vmul.f32 %v235, %v781
        %v789 = vmul.f32 %v236, %v781
        %v790 = vmul.f32 %v237, %v781
        %799 = vrot.lane.b32.xlu0 %v783, 27
        %v800 = vpop.permute.xlu0 %799
        %801 = vrot.lane.b32.xlu0 %v784, 27
        %v802 = vpop.permute.xlu0 %801
        %803 = vrot.lane.b32.xlu0 %v785, 27
        %v804 = vpop.permute.xlu0 %803
        %805 = vrot.lane.b32.xlu0 %v786, 27
        %v806 = vpop.permute.xlu0 %805
        %807 = vrot.lane.b32.xlu0 %v787, 27
        %v808 = vpop.permute.xlu0 %807
        %809 = vrot.lane.b32.xlu0 %v788, 27
        %v810 = vpop.permute.xlu0 %809
        %811 = vrot.lane.b32.xlu0 %v789, 27
        %v812 = vpop.permute.xlu0 %811
        %813 = vrot.lane.b32.xlu0 %v790, 27
        %v814 = vpop.permute.xlu0 %813
        %vm815 = vcmask 220160
        %v816 = vsel %vm815, %v800, %v802
        %v817 = vsel %vm815, %v802, %v804
        %v818 = vsel %vm815, %v804, %v806
        %v819 = vsel %vm815, %v806, %v808
        %v820 = vsel %vm815, %v808, %v810
        %v821 = vsel %vm815, %v810, %v812
        %v822 = vsel %vm815, %v812, %v814
        %v830 = vadd.f32 %v772, %v816
        %v831 = vadd.f32 %v773, %v817
        %v832 = vadd.f32 %v774, %v818
        %v833 = vadd.f32 %v775, %v819
        %v834 = vadd.f32 %v776, %v820
        %v835 = vadd.f32 %v777, %v821
        %v836 = vadd.f32 %v778, %v822
        %837 = vset.pattern.permute.xlu0 11
        %838 = vperm.xlu0 %837, %v227
        %v839 = vpop.permute.xlu0 %838
        %v841 = vmul.f32 %v230, %v839
        %v842 = vmul.f32 %v231, %v839
        %v843 = vmul.f32 %v232, %v839
        %v844 = vmul.f32 %v233, %v839
        %v845 = vmul.f32 %v234, %v839
        %v846 = vmul.f32 %v235, %v839
        %v847 = vmul.f32 %v236, %v839
        %v848 = vmul.f32 %v237, %v839
        %857 = vrot.lane.b32.xlu0 %v841, 26
        %v858 = vpop.permute.xlu0 %857
        %859 = vrot.lane.b32.xlu0 %v842, 26
        %v860 = vpop.permute.xlu0 %859
        %861 = vrot.lane.b32.xlu0 %v843, 26
        %v862 = vpop.permute.xlu0 %861
        %863 = vrot.lane.b32.xlu0 %v844, 26
        %v864 = vpop.permute.xlu0 %863
        %865 = vrot.lane.b32.xlu0 %v845, 26
        %v866 = vpop.permute.xlu0 %865
        %867 = vrot.lane.b32.xlu0 %v846, 26
        %v868 = vpop.permute.xlu0 %867
        %869 = vrot.lane.b32.xlu0 %v847, 26
        %v870 = vpop.permute.xlu0 %869
        %871 = vrot.lane.b32.xlu0 %v848, 26
        %v872 = vpop.permute.xlu0 %871
        %vm873 = vcmask 211968
        %v874 = vsel %vm873, %v858, %v860
        %v875 = vsel %vm873, %v860, %v862
        %v876 = vsel %vm873, %v862, %v864
        %v877 = vsel %vm873, %v864, %v866
        %v878 = vsel %vm873, %v866, %v868
        %v879 = vsel %vm873, %v868, %v870
        %v880 = vsel %vm873, %v870, %v872
        %v888 = vadd.f32 %v830, %v874
        %v889 = vadd.f32 %v831, %v875
        %v890 = vadd.f32 %v832, %v876
        %v891 = vadd.f32 %v833, %v877
        %v892 = vadd.f32 %v834, %v878
        %v893 = vadd.f32 %v835, %v879
        %v894 = vadd.f32 %v836, %v880
        %895 = vset.pattern.permute.xlu0 12
        %896 = vperm.xlu0 %895, %v227
        %v897 = vpop.permute.xlu0 %896
        %v899 = vmul.f32 %v230, %v897
        %v900 = vmul.f32 %v231, %v897
        %v901 = vmul.f32 %v232, %v897
        %v902 = vmul.f32 %v233, %v897
        %v903 = vmul.f32 %v234, %v897
        %v904 = vmul.f32 %v235, %v897
        %v905 = vmul.f32 %v236, %v897
        %v906 = vmul.f32 %v237, %v897
        %915 = vrot.lane.b32.xlu0 %v899, 18
        %v916 = vpop.permute.xlu0 %915
        %917 = vrot.lane.b32.xlu0 %v900, 18
        %v918 = vpop.permute.xlu0 %917
        %919 = vrot.lane.b32.xlu0 %v901, 18
        %v920 = vpop.permute.xlu0 %919
        %921 = vrot.lane.b32.xlu0 %v902, 18
        %v922 = vpop.permute.xlu0 %921
        %923 = vrot.lane.b32.xlu0 %v903, 18
        %v924 = vpop.permute.xlu0 %923
        %925 = vrot.lane.b32.xlu0 %v904, 18
        %v926 = vpop.permute.xlu0 %925
        %927 = vrot.lane.b32.xlu0 %v905, 18
        %v928 = vpop.permute.xlu0 %927
        %929 = vrot.lane.b32.xlu0 %v906, 18
        %v930 = vpop.permute.xlu0 %929
        %vm931 = vcmask 146432
        %v932 = vsel %vm931, %v916, %v918
        %v933 = vsel %vm931, %v918, %v920
        %v934 = vsel %vm931, %v920, %v922
        %v935 = vsel %vm931, %v922, %v924
        %v936 = vsel %vm931, %v924, %v926
        %v937 = vsel %vm931, %v926, %v928
        %v938 = vsel %vm931, %v928, %v930
        %v946 = vadd.f32 %v888, %v932
        %v947 = vadd.f32 %v889, %v933
        %v948 = vadd.f32 %v890, %v934
        %v949 = vadd.f32 %v891, %v935
        %v950 = vadd.f32 %v892, %v936
        %v951 = vadd.f32 %v893, %v937
        %v952 = vadd.f32 %v894, %v938
        %953 = vset.pattern.permute.xlu0 13
        %954 = vperm.xlu0 %953, %v227
        %v955 = vpop.permute.xlu0 %954
        %v957 = vmul.f32 %v230, %v955
        %v958 = vmul.f32 %v231, %v955
        %v959 = vmul.f32 %v232, %v955
        %v960 = vmul.f32 %v233, %v955
        %v961 = vmul.f32 %v234, %v955
        %v962 = vmul.f32 %v235, %v955
        %v963 = vmul.f32 %v236, %v955
        %v964 = vmul.f32 %v237, %v955
        %973 = vrot.lane.b32.xlu0 %v957, 17
        %v974 = vpop.permute.xlu0 %973
        %975 = vrot.lane.b32.xlu0 %v958, 17
        %v976 = vpop.permute.xlu0 %975
        %977 = vrot.lane.b32.xlu0 %v959, 17
        %v978 = vpop.permute.xlu0 %977
        %979 = vrot.lane.b32.xlu0 %v960, 17
        %v980 = vpop.permute.xlu0 %979
        %981 = vrot.lane.b32.xlu0 %v961, 17
        %v982 = vpop.permute.xlu0 %981
        %983 = vrot.lane.b32.xlu0 %v962, 17
        %v984 = vpop.permute.xlu0 %983
        %985 = vrot.lane.b32.xlu0 %v963, 17
        %v986 = vpop.permute.xlu0 %985
        %987 = vrot.lane.b32.xlu0 %v964, 17
        %v988 = vpop.permute.xlu0 %987
        %vm989 = vcmask 138240
        %v990 = vsel %vm989, %v974, %v976
        %v991 = vsel %vm989, %v976, %v978
        %v992 = vsel %vm989, %v978, %v980
        %v993 = vsel %vm989, %v980, %v982
        %v994 = vsel %vm989, %v982, %v984
        %v995 = vsel %vm989, %v984, %v986
        %v996 = vsel %vm989, %v986, %v988
        %v1004 = vadd.f32 %v946, %v990
        %v1005 = vadd.f32 %v947, %v991
        %v1006 = vadd.f32 %v948, %v992
        %v1007 = vadd.f32 %v949, %v993
        %v1008 = vadd.f32 %v950, %v994
        %v1009 = vadd.f32 %v951, %v995
        %v1010 = vadd.f32 %v952, %v996
        %1011 = vset.pattern.permute.xlu0 14
        %1012 = vperm.xlu0 %1011, %v227
        %v1013 = vpop.permute.xlu0 %1012
        %v1015 = vmul.f32 %v230, %v1013
        %v1016 = vmul.f32 %v231, %v1013
        %v1017 = vmul.f32 %v232, %v1013
        %v1018 = vmul.f32 %v233, %v1013
        %v1019 = vmul.f32 %v234, %v1013
        %v1020 = vmul.f32 %v235, %v1013
        %v1021 = vmul.f32 %v236, %v1013
        %v1022 = vmul.f32 %v237, %v1013
        %1031 = vrot.lane.b32.xlu0 %v1015, 16
        %v1032 = vpop.permute.xlu0 %1031
        %1033 = vrot.lane.b32.xlu0 %v1016, 16
        %v1034 = vpop.permute.xlu0 %1033
        %1035 = vrot.lane.b32.xlu0 %v1017, 16
        %v1036 = vpop.permute.xlu0 %1035
        %1037 = vrot.lane.b32.xlu0 %v1018, 16
        %v1038 = vpop.permute.xlu0 %1037
        %1039 = vrot.lane.b32.xlu0 %v1019, 16
        %v1040 = vpop.permute.xlu0 %1039
        %1041 = vrot.lane.b32.xlu0 %v1020, 16
        %v1042 = vpop.permute.xlu0 %1041
        %1043 = vrot.lane.b32.xlu0 %v1021, 16
        %v1044 = vpop.permute.xlu0 %1043
        %1045 = vrot.lane.b32.xlu0 %v1022, 16
        %v1046 = vpop.permute.xlu0 %1045
        %vm1047 = vcmask 130048
        %v1048 = vsel %vm1047, %v1032, %v1034
        %v1049 = vsel %vm1047, %v1034, %v1036
        %v1050 = vsel %vm1047, %v1036, %v1038
        %v1051 = vsel %vm1047, %v1038, %v1040
        %v1052 = vsel %vm1047, %v1040, %v1042
        %v1053 = vsel %vm1047, %v1042, %v1044
        %v1054 = vsel %vm1047, %v1044, %v1046
        %v1062 = vadd.f32 %v1004, %v1048
        %v1063 = vadd.f32 %v1005, %v1049
        %v1064 = vadd.f32 %v1006, %v1050
        %v1065 = vadd.f32 %v1007, %v1051
        %v1066 = vadd.f32 %v1008, %v1052
        %v1067 = vadd.f32 %v1009, %v1053
        %v1068 = vadd.f32 %v1010, %v1054
        %1069 = vset.pattern.permute.xlu0 15
        %1070 = vperm.xlu0 %1069, %v227
        %v1071 = vpop.permute.xlu0 %1070
        %v1073 = vmul.f32 %v230, %v1071
        %v1074 = vmul.f32 %v231, %v1071
        %v1075 = vmul.f32 %v232, %v1071
        %v1076 = vmul.f32 %v233, %v1071
        %v1077 = vmul.f32 %v234, %v1071
        %v1078 = vmul.f32 %v235, %v1071
        %v1079 = vmul.f32 %v236, %v1071
        %v1080 = vmul.f32 %v237, %v1071
        %1089 = vrot.lane.b32.xlu0 %v1073, 8
        %v1090 = vpop.permute.xlu0 %1089
        %1091 = vrot.lane.b32.xlu0 %v1074, 8
        %v1092 = vpop.permute.xlu0 %1091
        %1093 = vrot.lane.b32.xlu0 %v1075, 8
        %v1094 = vpop.permute.xlu0 %1093
        %1095 = vrot.lane.b32.xlu0 %v1076, 8
        %v1096 = vpop.permute.xlu0 %1095
        %1097 = vrot.lane.b32.xlu0 %v1077, 8
        %v1098 = vpop.permute.xlu0 %1097
        %1099 = vrot.lane.b32.xlu0 %v1078, 8
        %v1100 = vpop.permute.xlu0 %1099
        %1101 = vrot.lane.b32.xlu0 %v1079, 8
        %v1102 = vpop.permute.xlu0 %1101
        %1103 = vrot.lane.b32.xlu0 %v1080, 8
        %v1104 = vpop.permute.xlu0 %1103
        %vm1105 = vcmask 64512
        %v1106 = vsel %vm1105, %v1090, %v1092
        %v1107 = vsel %vm1105, %v1092, %v1094
        %v1108 = vsel %vm1105, %v1094, %v1096
        %v1109 = vsel %vm1105, %v1096, %v1098
        %v1110 = vsel %vm1105, %v1098, %v1100
        %v1111 = vsel %vm1105, %v1100, %v1102
        %v1112 = vsel %vm1105, %v1102, %v1104
        %v1120 = vadd.f32 %v1062, %v1106
        %v1121 = vadd.f32 %v1063, %v1107
        %v1122 = vadd.f32 %v1064, %v1108
        %v1123 = vadd.f32 %v1065, %v1109
        %v1124 = vadd.f32 %v1066, %v1110
        %v1125 = vadd.f32 %v1067, %v1111
        %v1126 = vadd.f32 %v1068, %v1112
        %1127 = vset.pattern.permute.xlu0 16
        %1128 = vperm.xlu0 %1127, %v227
        %v1129 = vpop.permute.xlu0 %1128
        %v1131 = vmul.f32 %v230, %v1129
        %v1132 = vmul.f32 %v231, %v1129
        %v1133 = vmul.f32 %v232, %v1129
        %v1134 = vmul.f32 %v233, %v1129
        %v1135 = vmul.f32 %v234, %v1129
        %v1136 = vmul.f32 %v235, %v1129
        %v1137 = vmul.f32 %v236, %v1129
        %v1138 = vmul.f32 %v237, %v1129
        %1147 = vrot.lane.b32.xlu0 %v1131, 7
        %v1148 = vpop.permute.xlu0 %1147
        %1149 = vrot.lane.b32.xlu0 %v1132, 7
        %v1150 = vpop.permute.xlu0 %1149
        %1151 = vrot.lane.b32.xlu0 %v1133, 7
        %v1152 = vpop.permute.xlu0 %1151
        %1153 = vrot.lane.b32.xlu0 %v1134, 7
        %v1154 = vpop.permute.xlu0 %1153
        %1155 = vrot.lane.b32.xlu0 %v1135, 7
        %v1156 = vpop.permute.xlu0 %1155
        %1157 = vrot.lane.b32.xlu0 %v1136, 7
        %v1158 = vpop.permute.xlu0 %1157
        %1159 = vrot.lane.b32.xlu0 %v1137, 7
        %v1160 = vpop.permute.xlu0 %1159
        %1161 = vrot.lane.b32.xlu0 %v1138, 7
        %v1162 = vpop.permute.xlu0 %1161
        %vm1163 = vcmask 56320
        %v1164 = vsel %vm1163, %v1148, %v1150
        %v1165 = vsel %vm1163, %v1150, %v1152
        %v1166 = vsel %vm1163, %v1152, %v1154
        %v1167 = vsel %vm1163, %v1154, %v1156
        %v1168 = vsel %vm1163, %v1156, %v1158
        %v1169 = vsel %vm1163, %v1158, %v1160
        %v1170 = vsel %vm1163, %v1160, %v1162
        %v1178 = vadd.f32 %v1120, %v1164
        %v1179 = vadd.f32 %v1121, %v1165
        %v1180 = vadd.f32 %v1122, %v1166
        %v1181 = vadd.f32 %v1123, %v1167
        %v1182 = vadd.f32 %v1124, %v1168
        %v1183 = vadd.f32 %v1125, %v1169
        %v1184 = vadd.f32 %v1126, %v1170
        %1185 = vset.pattern.permute.xlu0 17
        %1186 = vperm.xlu0 %1185, %v227
        %v1187 = vpop.permute.xlu0 %1186
        %v1189 = vmul.f32 %v230, %v1187
        %v1190 = vmul.f32 %v231, %v1187
        %v1191 = vmul.f32 %v232, %v1187
        %v1192 = vmul.f32 %v233, %v1187
        %v1193 = vmul.f32 %v234, %v1187
        %v1194 = vmul.f32 %v235, %v1187
        %v1195 = vmul.f32 %v236, %v1187
        %v1196 = vmul.f32 %v237, %v1187
        %1205 = vrot.lane.b32.xlu0 %v1189, 6
        %v1206 = vpop.permute.xlu0 %1205
        %1207 = vrot.lane.b32.xlu0 %v1190, 6
        %v1208 = vpop.permute.xlu0 %1207
        %1209 = vrot.lane.b32.xlu0 %v1191, 6
        %v1210 = vpop.permute.xlu0 %1209
        %1211 = vrot.lane.b32.xlu0 %v1192, 6
        %v1212 = vpop.permute.xlu0 %1211
        %1213 = vrot.lane.b32.xlu0 %v1193, 6
        %v1214 = vpop.permute.xlu0 %1213
        %1215 = vrot.lane.b32.xlu0 %v1194, 6
        %v1216 = vpop.permute.xlu0 %1215
        %1217 = vrot.lane.b32.xlu0 %v1195, 6
        %v1218 = vpop.permute.xlu0 %1217
        %1219 = vrot.lane.b32.xlu0 %v1196, 6
        %v1220 = vpop.permute.xlu0 %1219
        %vm1221 = vcmask 48128
        %v1222 = vsel %vm1221, %v1206, %v1208
        %v1223 = vsel %vm1221, %v1208, %v1210
        %v1224 = vsel %vm1221, %v1210, %v1212
        %v1225 = vsel %vm1221, %v1212, %v1214
        %v1226 = vsel %vm1221, %v1214, %v1216
        %v1227 = vsel %vm1221, %v1216, %v1218
        %v1228 = vsel %vm1221, %v1218, %v1220
        %v1236 = vadd.f32 %v1178, %v1222
        %v1237 = vadd.f32 %v1179, %v1223
        %v1238 = vadd.f32 %v1180, %v1224
        %v1239 = vadd.f32 %v1181, %v1225
        %v1240 = vadd.f32 %v1182, %v1226
        %v1241 = vadd.f32 %v1183, %v1227
        %v1242 = vadd.f32 %v1184, %v1228
        %v1243 = vld [vmem:[%s198 + $0x8] sm:$0xff]
        %v1244 = vld [vmem:[%s198 + $0x10] sm:$0xff]
        %v1245 = vld [vmem:[%s198 + $0x18] sm:$0xff]
        %v1246 = vld [vmem:[%s198 + $0x20] sm:$0xff]
        %v1247 = vld [vmem:[%s198 + $0x28] sm:$0xff]
        %v1248 = vld [vmem:[%s198 + $0x30] sm:$0xff]
        %v1249 = vld [vmem:[%s198 + $0x38] sm:$0xff]
        %v1250 = vld [vmem:[%s198 + $0x40] sm:$0xff]
        %1251 = vset.pattern.permute.xlu0 18
        %1252 = vperm.xlu0 %1251, %v227
        %v1253 = vpop.permute.xlu0 %1252
        %v1255 = vmul.f32 %v1243, %v1253
        %v1256 = vmul.f32 %v1244, %v1253
        %v1257 = vmul.f32 %v1245, %v1253
        %v1258 = vmul.f32 %v1246, %v1253
        %v1259 = vmul.f32 %v1247, %v1253
        %v1260 = vmul.f32 %v1248, %v1253
        %v1261 = vmul.f32 %v1249, %v1253
        %v1262 = vmul.f32 %v1250, %v1253
        %1271 = vrot.lane.b32.xlu0 %v1255, 56
        %v1272 = vpop.permute.xlu0 %1271
        %1273 = vrot.lane.b32.xlu0 %v1256, 56
        %v1274 = vpop.permute.xlu0 %1273
        %1275 = vrot.lane.b32.xlu0 %v1257, 56
        %v1276 = vpop.permute.xlu0 %1275
        %1277 = vrot.lane.b32.xlu0 %v1258, 56
        %v1278 = vpop.permute.xlu0 %1277
        %1279 = vrot.lane.b32.xlu0 %v1259, 56
        %v1280 = vpop.permute.xlu0 %1279
        %1281 = vrot.lane.b32.xlu0 %v1260, 56
        %v1282 = vpop.permute.xlu0 %1281
        %1283 = vrot.lane.b32.xlu0 %v1261, 56
        %v1284 = vpop.permute.xlu0 %1283
        %1285 = vrot.lane.b32.xlu0 %v1262, 56
        %v1286 = vpop.permute.xlu0 %1285
        %vm1287 = vcmask 457728
        %v1288 = vsel %vm1287, %v1272, %v1274
        %v1289 = vsel %vm1287, %v1274, %v1276
        %v1290 = vsel %vm1287, %v1276, %v1278
        %v1291 = vsel %vm1287, %v1278, %v1280
        %v1292 = vsel %vm1287, %v1280, %v1282
        %v1293 = vsel %vm1287, %v1282, %v1284
        %v1294 = vsel %vm1287, %v1284, %v1286
        %v1302 = vadd.f32 %v1236, %v1288
        %v1303 = vadd.f32 %v1237, %v1289
        %v1304 = vadd.f32 %v1238, %v1290
        %v1305 = vadd.f32 %v1239, %v1291
        %v1306 = vadd.f32 %v1240, %v1292
        %v1307 = vadd.f32 %v1241, %v1293
        %v1308 = vadd.f32 %v1242, %v1294
        %1309 = vset.pattern.permute.xlu0 19
        %1310 = vperm.xlu0 %1309, %v227
        %v1311 = vpop.permute.xlu0 %1310
        %v1313 = vmul.f32 %v1243, %v1311
        %v1314 = vmul.f32 %v1244, %v1311
        %v1315 = vmul.f32 %v1245, %v1311
        %v1316 = vmul.f32 %v1246, %v1311
        %v1317 = vmul.f32 %v1247, %v1311
        %v1318 = vmul.f32 %v1248, %v1311
        %v1319 = vmul.f32 %v1249, %v1311
        %v1320 = vmul.f32 %v1250, %v1311
        %1329 = vrot.lane.b32.xlu0 %v1313, 55
        %v1330 = vpop.permute.xlu0 %1329
        %1331 = vrot.lane.b32.xlu0 %v1314, 55
        %v1332 = vpop.permute.xlu0 %1331
        %1333 = vrot.lane.b32.xlu0 %v1315, 55
        %v1334 = vpop.permute.xlu0 %1333
        %1335 = vrot.lane.b32.xlu0 %v1316, 55
        %v1336 = vpop.permute.xlu0 %1335
        %1337 = vrot.lane.b32.xlu0 %v1317, 55
        %v1338 = vpop.permute.xlu0 %1337
        %1339 = vrot.lane.b32.xlu0 %v1318, 55
        %v1340 = vpop.permute.xlu0 %1339
        %1341 = vrot.lane.b32.xlu0 %v1319, 55
        %v1342 = vpop.permute.xlu0 %1341
        %1343 = vrot.lane.b32.xlu0 %v1320, 55
        %v1344 = vpop.permute.xlu0 %1343
        %vm1345 = vcmask 449536
        %v1346 = vsel %vm1345, %v1330, %v1332
        %v1347 = vsel %vm1345, %v1332, %v1334
        %v1348 = vsel %vm1345, %v1334, %v1336
        %v1349 = vsel %vm1345, %v1336, %v1338
        %v1350 = vsel %vm1345, %v1338, %v1340
        %v1351 = vsel %vm1345, %v1340, %v1342
        %v1352 = vsel %vm1345, %v1342, %v1344
        %v1360 = vadd.f32 %v1302, %v1346
        %v1361 = vadd.f32 %v1303, %v1347
        %v1362 = vadd.f32 %v1304, %v1348
        %v1363 = vadd.f32 %v1305, %v1349
        %v1364 = vadd.f32 %v1306, %v1350
        %v1365 = vadd.f32 %v1307, %v1351
        %v1366 = vadd.f32 %v1308, %v1352
        %1367 = vset.pattern.permute.xlu0 20
        %1368 = vperm.xlu0 %1367, %v227
        %v1369 = vpop.permute.xlu0 %1368
        %v1371 = vmul.f32 %v1243, %v1369
        %v1372 = vmul.f32 %v1244, %v1369
        %v1373 = vmul.f32 %v1245, %v1369
        %v1374 = vmul.f32 %v1246, %v1369
        %v1375 = vmul.f32 %v1247, %v1369
        %v1376 = vmul.f32 %v1248, %v1369
        %v1377 = vmul.f32 %v1249, %v1369
        %v1378 = vmul.f32 %v1250, %v1369
        %1387 = vrot.lane.b32.xlu0 %v1371, 54
        %v1388 = vpop.permute.xlu0 %1387
        %1389 = vrot.lane.b32.xlu0 %v1372, 54
        %v1390 = vpop.permute.xlu0 %1389
        %1391 = vrot.lane.b32.xlu0 %v1373, 54
        %v1392 = vpop.permute.xlu0 %1391
        %1393 = vrot.lane.b32.xlu0 %v1374, 54
        %v1394 = vpop.permute.xlu0 %1393
        %1395 = vrot.lane.b32.xlu0 %v1375, 54
        %v1396 = vpop.permute.xlu0 %1395
        %1397 = vrot.lane.b32.xlu0 %v1376, 54
        %v1398 = vpop.permute.xlu0 %1397
        %1399 = vrot.lane.b32.xlu0 %v1377, 54
        %v1400 = vpop.permute.xlu0 %1399
        %1401 = vrot.lane.b32.xlu0 %v1378, 54
        %v1402 = vpop.permute.xlu0 %1401
        %vm1403 = vcmask 441344
        %v1404 = vsel %vm1403, %v1388, %v1390
        %v1405 = vsel %vm1403, %v1390, %v1392
        %v1406 = vsel %vm1403, %v1392, %v1394
        %v1407 = vsel %vm1403, %v1394, %v1396
        %v1408 = vsel %vm1403, %v1396, %v1398
        %v1409 = vsel %vm1403, %v1398, %v1400
        %v1410 = vsel %vm1403, %v1400, %v1402
        %v1418 = vadd.f32 %v1360, %v1404
        %v1419 = vadd.f32 %v1361, %v1405
        %v1420 = vadd.f32 %v1362, %v1406
        %v1421 = vadd.f32 %v1363, %v1407
        %v1422 = vadd.f32 %v1364, %v1408
        %v1423 = vadd.f32 %v1365, %v1409
        %v1424 = vadd.f32 %v1366, %v1410
        %1425 = vset.pattern.permute.xlu0 21
        %1426 = vperm.xlu0 %1425, %v227
        %v1427 = vpop.permute.xlu0 %1426
        %v1429 = vmul.f32 %v1243, %v1427
        %v1430 = vmul.f32 %v1244, %v1427
        %v1431 = vmul.f32 %v1245, %v1427
        %v1432 = vmul.f32 %v1246, %v1427
        %v1433 = vmul.f32 %v1247, %v1427
        %v1434 = vmul.f32 %v1248, %v1427
        %v1435 = vmul.f32 %v1249, %v1427
        %v1436 = vmul.f32 %v1250, %v1427
        %1445 = vrot.lane.b32.xlu0 %v1429, 46
        %v1446 = vpop.permute.xlu0 %1445
        %1447 = vrot.lane.b32.xlu0 %v1430, 46
        %v1448 = vpop.permute.xlu0 %1447
        %1449 = vrot.lane.b32.xlu0 %v1431, 46
        %v1450 = vpop.permute.xlu0 %1449
        %1451 = vrot.lane.b32.xlu0 %v1432, 46
        %v1452 = vpop.permute.xlu0 %1451
        %1453 = vrot.lane.b32.xlu0 %v1433, 46
        %v1454 = vpop.permute.xlu0 %1453
        %1455 = vrot.lane.b32.xlu0 %v1434, 46
        %v1456 = vpop.permute.xlu0 %1455
        %1457 = vrot.lane.b32.xlu0 %v1435, 46
        %v1458 = vpop.permute.xlu0 %1457
        %1459 = vrot.lane.b32.xlu0 %v1436, 46
        %v1460 = vpop.permute.xlu0 %1459
        %vm1461 = vcmask 375808
        %v1462 = vsel %vm1461, %v1446, %v1448
        %v1463 = vsel %vm1461, %v1448, %v1450
        %v1464 = vsel %vm1461, %v1450, %v1452
        %v1465 = vsel %vm1461, %v1452, %v1454
        %v1466 = vsel %vm1461, %v1454, %v1456
        %v1467 = vsel %vm1461, %v1456, %v1458
        %v1468 = vsel %vm1461, %v1458, %v1460
        %v1476 = vadd.f32 %v1418, %v1462
        %v1477 = vadd.f32 %v1419, %v1463
        %v1478 = vadd.f32 %v1420, %v1464
        %v1479 = vadd.f32 %v1421, %v1465
        %v1480 = vadd.f32 %v1422, %v1466
        %v1481 = vadd.f32 %v1423, %v1467
        %v1482 = vadd.f32 %v1424, %v1468
        %1483 = vset.pattern.permute.xlu0 22
        %1484 = vperm.xlu0 %1483, %v227
        %v1485 = vpop.permute.xlu0 %1484
        %v1487 = vmul.f32 %v1243, %v1485
        %v1488 = vmul.f32 %v1244, %v1485
        %v1489 = vmul.f32 %v1245, %v1485
        %v1490 = vmul.f32 %v1246, %v1485
        %v1491 = vmul.f32 %v1247, %v1485
        %v1492 = vmul.f32 %v1248, %v1485
        %v1493 = vmul.f32 %v1249, %v1485
        %v1494 = vmul.f32 %v1250, %v1485
        %1503 = vrot.lane.b32.xlu0 %v1487, 45
        %v1504 = vpop.permute.xlu0 %1503
        %1505 = vrot.lane.b32.xlu0 %v1488, 45
        %v1506 = vpop.permute.xlu0 %1505
        %1507 = vrot.lane.b32.xlu0 %v1489, 45
        %v1508 = vpop.permute.xlu0 %1507
        %1509 = vrot.lane.b32.xlu0 %v1490, 45
        %v1510 = vpop.permute.xlu0 %1509
        %1511 = vrot.lane.b32.xlu0 %v1491, 45
        %v1512 = vpop.permute.xlu0 %1511
        %1513 = vrot.lane.b32.xlu0 %v1492, 45
        %v1514 = vpop.permute.xlu0 %1513
        %1515 = vrot.lane.b32.xlu0 %v1493, 45
        %v1516 = vpop.permute.xlu0 %1515
        %1517 = vrot.lane.b32.xlu0 %v1494, 45
        %v1518 = vpop.permute.xlu0 %1517
        %vm1519 = vcmask 367616
        %v1520 = vsel %vm1519, %v1504, %v1506
        %v1521 = vsel %vm1519, %v1506, %v1508
        %v1522 = vsel %vm1519, %v1508, %v1510
        %v1523 = vsel %vm1519, %v1510, %v1512
        %v1524 = vsel %vm1519, %v1512, %v1514
        %v1525 = vsel %vm1519, %v1514, %v1516
        %v1526 = vsel %vm1519, %v1516, %v1518
        %v1534 = vadd.f32 %v1476, %v1520
        %v1535 = vadd.f32 %v1477, %v1521
        %v1536 = vadd.f32 %v1478, %v1522
        %v1537 = vadd.f32 %v1479, %v1523
        %v1538 = vadd.f32 %v1480, %v1524
        %v1539 = vadd.f32 %v1481, %v1525
        %v1540 = vadd.f32 %v1482, %v1526
        %1541 = vset.pattern.permute.xlu0 23
        %1542 = vperm.xlu0 %1541, %v227
        %v1543 = vpop.permute.xlu0 %1542
        %v1545 = vmul.f32 %v1243, %v1543
        %v1546 = vmul.f32 %v1244, %v1543
        %v1547 = vmul.f32 %v1245, %v1543
        %v1548 = vmul.f32 %v1246, %v1543
        %v1549 = vmul.f32 %v1247, %v1543
        %v1550 = vmul.f32 %v1248, %v1543
        %v1551 = vmul.f32 %v1249, %v1543
        %v1552 = vmul.f32 %v1250, %v1543
        %1561 = vrot.lane.b32.xlu0 %v1545, 44
        %v1562 = vpop.permute.xlu0 %1561
        %1563 = vrot.lane.b32.xlu0 %v1546, 44
        %v1564 = vpop.permute.xlu0 %1563
        %1565 = vrot.lane.b32.xlu0 %v1547, 44
        %v1566 = vpop.permute.xlu0 %1565
        %1567 = vrot.lane.b32.xlu0 %v1548, 44
        %v1568 = vpop.permute.xlu0 %1567
        %1569 = vrot.lane.b32.xlu0 %v1549, 44
        %v1570 = vpop.permute.xlu0 %1569
        %1571 = vrot.lane.b32.xlu0 %v1550, 44
        %v1572 = vpop.permute.xlu0 %1571
        %1573 = vrot.lane.b32.xlu0 %v1551, 44
        %v1574 = vpop.permute.xlu0 %1573
        %1575 = vrot.lane.b32.xlu0 %v1552, 44
        %v1576 = vpop.permute.xlu0 %1575
        %vm1577 = vcmask 359424
        %v1578 = vsel %vm1577, %v1562, %v1564
        %v1579 = vsel %vm1577, %v1564, %v1566
        %v1580 = vsel %vm1577, %v1566, %v1568
        %v1581 = vsel %vm1577, %v1568, %v1570
        %v1582 = vsel %vm1577, %v1570, %v1572
        %v1583 = vsel %vm1577, %v1572, %v1574
        %v1584 = vsel %vm1577, %v1574, %v1576
        %v1592 = vadd.f32 %v1534, %v1578
        %v1593 = vadd.f32 %v1535, %v1579
        %v1594 = vadd.f32 %v1536, %v1580
        %v1595 = vadd.f32 %v1537, %v1581
        %v1596 = vadd.f32 %v1538, %v1582
        %v1597 = vadd.f32 %v1539, %v1583
        %v1598 = vadd.f32 %v1540, %v1584
        %1599 = vset.pattern.permute.xlu0 24
        %1600 = vperm.xlu0 %1599, %v227
        %v1601 = vpop.permute.xlu0 %1600
        %v1603 = vmul.f32 %v1243, %v1601
        %v1604 = vmul.f32 %v1244, %v1601
        %v1605 = vmul.f32 %v1245, %v1601
        %v1606 = vmul.f32 %v1246, %v1601
        %v1607 = vmul.f32 %v1247, %v1601
        %v1608 = vmul.f32 %v1248, %v1601
        %v1609 = vmul.f32 %v1249, %v1601
        %v1610 = vmul.f32 %v1250, %v1601
        %1619 = vrot.lane.b32.xlu0 %v1603, 36
        %v1620 = vpop.permute.xlu0 %1619
        %1621 = vrot.lane.b32.xlu0 %v1604, 36
        %v1622 = vpop.permute.xlu0 %1621
        %1623 = vrot.lane.b32.xlu0 %v1605, 36
        %v1624 = vpop.permute.xlu0 %1623
        %1625 = vrot.lane.b32.xlu0 %v1606, 36
        %v1626 = vpop.permute.xlu0 %1625
        %1627 = vrot.lane.b32.xlu0 %v1607, 36
        %v1628 = vpop.permute.xlu0 %1627
        %1629 = vrot.lane.b32.xlu0 %v1608, 36
        %v1630 = vpop.permute.xlu0 %1629
        %1631 = vrot.lane.b32.xlu0 %v1609, 36
        %v1632 = vpop.permute.xlu0 %1631
        %1633 = vrot.lane.b32.xlu0 %v1610, 36
        %v1634 = vpop.permute.xlu0 %1633
        %vm1635 = vcmask 293888
        %v1636 = vsel %vm1635, %v1620, %v1622
        %v1637 = vsel %vm1635, %v1622, %v1624
        %v1638 = vsel %vm1635, %v1624, %v1626
        %v1639 = vsel %vm1635, %v1626, %v1628
        %v1640 = vsel %vm1635, %v1628, %v1630
        %v1641 = vsel %vm1635, %v1630, %v1632
        %v1642 = vsel %vm1635, %v1632, %v1634
        %v1650 = vadd.f32 %v1592, %v1636
        %v1651 = vadd.f32 %v1593, %v1637
        %v1652 = vadd.f32 %v1594, %v1638
        %v1653 = vadd.f32 %v1595, %v1639
        %v1654 = vadd.f32 %v1596, %v1640
        %v1655 = vadd.f32 %v1597, %v1641
        %v1656 = vadd.f32 %v1598, %v1642
        %1657 = vset.pattern.permute.xlu0 25
        %1658 = vperm.xlu0 %1657, %v227
        %v1659 = vpop.permute.xlu0 %1658
        %v1661 = vmul.f32 %v1243, %v1659
        %v1662 = vmul.f32 %v1244, %v1659
        %v1663 = vmul.f32 %v1245, %v1659
        %v1664 = vmul.f32 %v1246, %v1659
        %v1665 = vmul.f32 %v1247, %v1659
        %v1666 = vmul.f32 %v1248, %v1659
        %v1667 = vmul.f32 %v1249, %v1659
        %v1668 = vmul.f32 %v1250, %v1659
        %1677 = vrot.lane.b32.xlu0 %v1661, 35
        %v1678 = vpop.permute.xlu0 %1677
        %1679 = vrot.lane.b32.xlu0 %v1662, 35
        %v1680 = vpop.permute.xlu0 %1679
        %1681 = vrot.lane.b32.xlu0 %v1663, 35
        %v1682 = vpop.permute.xlu0 %1681
        %1683 = vrot.lane.b32.xlu0 %v1664, 35
        %v1684 = vpop.permute.xlu0 %1683
        %1685 = vrot.lane.b32.xlu0 %v1665, 35
        %v1686 = vpop.permute.xlu0 %1685
        %1687 = vrot.lane.b32.xlu0 %v1666, 35
        %v1688 = vpop.permute.xlu0 %1687
        %1689 = vrot.lane.b32.xlu0 %v1667, 35
        %v1690 = vpop.permute.xlu0 %1689
        %1691 = vrot.lane.b32.xlu0 %v1668, 35
        %v1692 = vpop.permute.xlu0 %1691
        %vm1693 = vcmask 285696
        %v1694 = vsel %vm1693, %v1678, %v1680
        %v1695 = vsel %vm1693, %v1680, %v1682
        %v1696 = vsel %vm1693, %v1682, %v1684
        %v1697 = vsel %vm1693, %v1684, %v1686
        %v1698 = vsel %vm1693, %v1686, %v1688
        %v1699 = vsel %vm1693, %v1688, %v1690
        %v1700 = vsel %vm1693, %v1690, %v1692
        %v1708 = vadd.f32 %v1650, %v1694
        %v1709 = vadd.f32 %v1651, %v1695
        %v1710 = vadd.f32 %v1652, %v1696
        %v1711 = vadd.f32 %v1653, %v1697
        %v1712 = vadd.f32 %v1654, %v1698
        %v1713 = vadd.f32 %v1655, %v1699
        %v1714 = vadd.f32 %v1656, %v1700
        %1715 = vset.pattern.permute.xlu0 26
        %1716 = vperm.xlu0 %1715, %v227
        %v1717 = vpop.permute.xlu0 %1716
        %v1719 = vmul.f32 %v1243, %v1717
        %v1720 = vmul.f32 %v1244, %v1717
        %v1721 = vmul.f32 %v1245, %v1717
        %v1722 = vmul.f32 %v1246, %v1717
        %v1723 = vmul.f32 %v1247, %v1717
        %v1724 = vmul.f32 %v1248, %v1717
        %v1725 = vmul.f32 %v1249, %v1717
        %v1726 = vmul.f32 %v1250, %v1717
        %1735 = vrot.lane.b32.xlu0 %v1719, 34
        %v1736 = vpop.permute.xlu0 %1735
        %1737 = vrot.lane.b32.xlu0 %v1720, 34
        %v1738 = vpop.permute.xlu0 %1737
        %1739 = vrot.lane.b32.xlu0 %v1721, 34
        %v1740 = vpop.permute.xlu0 %1739
        %1741 = vrot.lane.b32.xlu0 %v1722, 34
        %v1742 = vpop.permute.xlu0 %1741
        %1743 = vrot.lane.b32.xlu0 %v1723, 34
        %v1744 = vpop.permute.xlu0 %1743
        %1745 = vrot.lane.b32.xlu0 %v1724, 34
        %v1746 = vpop.permute.xlu0 %1745
        %1747 = vrot.lane.b32.xlu0 %v1725, 34
        %v1748 = vpop.permute.xlu0 %1747
        %1749 = vrot.lane.b32.xlu0 %v1726, 34
        %v1750 = vpop.permute.xlu0 %1749
        %vm1751 = vcmask 277504
        %v1752 = vsel %vm1751, %v1736, %v1738
        %v1753 = vsel %vm1751, %v1738, %v1740
        %v1754 = vsel %vm1751, %v1740, %v1742
        %v1755 = vsel %vm1751, %v1742, %v1744
        %v1756 = vsel %vm1751, %v1744, %v1746
        %v1757 = vsel %vm1751, %v1746, %v1748
        %v1758 = vsel %vm1751, %v1748, %v1750
        %v1766 = vadd.f32 %v1708, %v1752
        %v1767 = vadd.f32 %v1709, %v1753
        %v1768 = vadd.f32 %v1710, %v1754
        %v1769 = vadd.f32 %v1711, %v1755
        %v1770 = vadd.f32 %v1712, %v1756
        %v1771 = vadd.f32 %v1713, %v1757
        %v1772 = vadd.f32 %v1714, %v1758
        %1774 = vset.pattern.permute.xlu0 0
        %1775 = vperm.xlu0 %1774, %v229
        %v1776 = vpop.permute.xlu0 %1775
        %v1779 = vsel %vm1105, %v228, 0
        %1781 = vmatprep.subr.mxu0 0.0
        %1782 = vmatpush1.msra.mxu0 0.0
        %1783 = vmatprep.subr.mxu0 0.0
        %1784 = vmatpush1.msra.mxu0 0.0
        %1785 = vmatprep.subr.mxu0 0.0
        %1786 = vmatpush1.msra.mxu0 0.0
        %1787 = vmatprep.subr.mxu0 0.0
        %1788 = vmatpush1.msra.mxu0 0.0
        %1789 = vmatprep.subr.mxu0 0.0
        %1790 = vmatpush1.msra.mxu0 0.0
        %1791 = vmatprep.subr.mxu0 0.0
        %1792 = vmatpush1.msra.mxu0 0.0
        %1793 = vmatprep.subr.mxu0 0.0
        %1794 = vmatpush1.msra.mxu0 0.0
        %1795 = vmatprep.subr.mxu0 0.0
        %1796 = vmatpush1.msra.mxu0 0.0
        %1797 = vmatprep.subr.mxu0 0.0
        %1798 = vmatpush1.msra.mxu0 0.0
        %1799 = vmatprep.subr.mxu0 0.0
        %1800 = vmatpush1.msra.mxu0 0.0
        %1801 = vmatprep.subr.mxu0 0.0
        %1802 = vmatpush1.msra.mxu0 0.0
        %1803 = vmatprep.subr.mxu0 0.0
        %1804 = vmatpush1.msra.mxu0 0.0
        %1805 = vmatprep.subr.mxu0 0.0
        %1806 = vmatpush1.msra.mxu0 0.0
        %1807 = vmatprep.subr.mxu0 0.0
        %1808 = vmatpush1.msra.mxu0 0.0
        %1809 = vmatprep.subr.mxu0 0.0
        %1810 = vmatpush1.msra.mxu0 0.0
        %1811 = vmatprep.subr.mxu0 %v1767
        %1812 = vmatpush1.msra.mxu0 %v1766
        %1813 = vmatprep.subr.mxu0 0.0
        %1814 = vmatpush2.msra.mxu0 0.0
        %1815 = vmatprep.subr.mxu0 0.0
        %1816 = vmatpush2.msra.mxu0 0.0
        %1817 = vmatprep.subr.mxu0 0.0
        %1818 = vmatpush2.msra.mxu0 0.0
        %1819 = vmatprep.subr.mxu0 0.0
        %1820 = vmatpush2.msra.mxu0 0.0
        %1821 = vmatprep.subr.mxu0 0.0
        %1822 = vmatpush2.msra.mxu0 0.0
        %1823 = vmatprep.subr.mxu0 0.0
        %1824 = vmatpush2.msra.mxu0 0.0
        %1825 = vmatprep.subr.mxu0 0.0
        %1826 = vmatpush2.msra.mxu0 0.0
        %1827 = vmatprep.subr.mxu0 0.0
        %1828 = vmatpush2.msra.mxu0 0.0
        %1829 = vmatprep.subr.mxu0 0.0
        %1830 = vmatpush2.msra.mxu0 0.0
        %1831 = vmatprep.subr.mxu0 0.0
        %1832 = vmatpush2.msra.mxu0 0.0
        %1833 = vmatprep.subr.mxu0 0.0
        %1834 = vmatpush2.msra.mxu0 0.0
        %1835 = vmatprep.subr.mxu0 0.0
        %1836 = vmatpush2.msra.mxu0 0.0
        %1837 = vmatprep.subr.mxu0 0.0
        %1838 = vmatpush2.msra.mxu0 0.0
        %1839 = vmatprep.subr.mxu0 0.0
        %1840 = vmatpush2.msra.mxu0 0.0
        %1841 = vmatprep.subr.mxu0 0.0
        %1842 = vmatpush2.msra.mxu0 0.0
        %1843 = vmatprep.subr.mxu0 0.0
        %1844 = vmatpush2.msra.mxu0 0.0
        %1845 = vmatprep.mubr.f32.mxu0 0.0
        %1846 = vmatmul.mubr.f32.gmra.mxu0 %v1779
        %v1847 = vpop.f32.mrf.mxu0
        %v1848 = vadd.f32 %v1776, %v1847
        %v1849 = vpop.f32.mrf.mxu0
        %v1850 = vadd.f32 %v1776, %v1849
        %1851 = vdwg.mxu0
        %1852 = vmatprep.subr.mxu0 0.0
        %1853 = vmatpush1.msra.mxu0 0.0
        %1854 = vmatprep.subr.mxu0 0.0
        %1855 = vmatpush1.msra.mxu0 0.0
        %1856 = vmatprep.subr.mxu0 0.0
        %1857 = vmatpush1.msra.mxu0 0.0
        %1858 = vmatprep.subr.mxu0 0.0
        %1859 = vmatpush1.msra.mxu0 0.0
        %1860 = vmatprep.subr.mxu0 0.0
        %1861 = vmatpush1.msra.mxu0 0.0
        %1862 = vmatprep.subr.mxu0 0.0
        %1863 = vmatpush1.msra.mxu0 0.0
        %1864 = vmatprep.subr.mxu0 0.0
        %1865 = vmatpush1.msra.mxu0 0.0
        %1866 = vmatprep.subr.mxu0 0.0
        %1867 = vmatpush1.msra.mxu0 0.0
        %1868 = vmatprep.subr.mxu0 0.0
        %1869 = vmatpush1.msra.mxu0 0.0
        %1870 = vmatprep.subr.mxu0 0.0
        %1871 = vmatpush1.msra.mxu0 0.0
        %1872 = vmatprep.subr.mxu0 0.0
        %1873 = vmatpush1.msra.mxu0 0.0
        %1874 = vmatprep.subr.mxu0 0.0
        %1875 = vmatpush1.msra.mxu0 0.0
        %1876 = vmatprep.subr.mxu0 0.0
        %1877 = vmatpush1.msra.mxu0 0.0
        %1878 = vmatprep.subr.mxu0 0.0
        %1879 = vmatpush1.msra.mxu0 0.0
        %1880 = vmatprep.subr.mxu0 0.0
        %1881 = vmatpush1.msra.mxu0 0.0
        %1882 = vmatprep.subr.mxu0 %v1769
        %1883 = vmatpush1.msra.mxu0 %v1768
        %1884 = vmatprep.subr.mxu0 0.0
        %1885 = vmatpush2.msra.mxu0 0.0
        %1886 = vmatprep.subr.mxu0 0.0
        %1887 = vmatpush2.msra.mxu0 0.0
        %1888 = vmatprep.subr.mxu0 0.0
        %1889 = vmatpush2.msra.mxu0 0.0
        %1890 = vmatprep.subr.mxu0 0.0
        %1891 = vmatpush2.msra.mxu0 0.0
        %1892 = vmatprep.subr.mxu0 0.0
        %1893 = vmatpush2.msra.mxu0 0.0
        %1894 = vmatprep.subr.mxu0 0.0
        %1895 = vmatpush2.msra.mxu0 0.0
        %1896 = vmatprep.subr.mxu0 0.0
        %1897 = vmatpush2.msra.mxu0 0.0
        %1898 = vmatprep.subr.mxu0 0.0
        %1899 = vmatpush2.msra.mxu0 0.0
        %1900 = vmatprep.subr.mxu0 0.0
        %1901 = vmatpush2.msra.mxu0 0.0
        %1902 = vmatprep.subr.mxu0 0.0
        %1903 = vmatpush2.msra.mxu0 0.0
        %1904 = vmatprep.subr.mxu0 0.0
        %1905 = vmatpush2.msra.mxu0 0.0
        %1906 = vmatprep.subr.mxu0 0.0
        %1907 = vmatpush2.msra.mxu0 0.0
        %1908 = vmatprep.subr.mxu0 0.0
        %1909 = vmatpush2.msra.mxu0 0.0
        %1910 = vmatprep.subr.mxu0 0.0
        %1911 = vmatpush2.msra.mxu0 0.0
        %1912 = vmatprep.subr.mxu0 0.0
        %1913 = vmatpush2.msra.mxu0 0.0
        %1914 = vmatprep.subr.mxu0 0.0
        %1915 = vmatpush2.msra.mxu0 0.0
        %1916 = vmatprep.mubr.f32.mxu0 0.0
        %1917 = vmatmul.mubr.f32.gmra.mxu0 %v1779
        %v1918 = vpop.f32.mrf.mxu0
        %v1919 = vadd.f32 %v1776, %v1918
        %v1920 = vpop.f32.mrf.mxu0
        %v1921 = vadd.f32 %v1776, %v1920
        %1922 = vdwg.mxu0
        %1923 = vmatprep.subr.mxu0 0.0
        %1924 = vmatpush1.msra.mxu0 0.0
        %1925 = vmatprep.subr.mxu0 0.0
        %1926 = vmatpush1.msra.mxu0 0.0
        %1927 = vmatprep.subr.mxu0 0.0
        %1928 = vmatpush1.msra.mxu0 0.0
        %1929 = vmatprep.subr.mxu0 0.0
        %1930 = vmatpush1.msra.mxu0 0.0
        %1931 = vmatprep.subr.mxu0 0.0
        %1932 = vmatpush1.msra.mxu0 0.0
        %1933 = vmatprep.subr.mxu0 0.0
        %1934 = vmatpush1.msra.mxu0 0.0
        %1935 = vmatprep.subr.mxu0 0.0
        %1936 = vmatpush1.msra.mxu0 0.0
        %1937 = vmatprep.subr.mxu0 0.0
        %1938 = vmatpush1.msra.mxu0 0.0
        %1939 = vmatprep.subr.mxu0 0.0
        %1940 = vmatpush1.msra.mxu0 0.0
        %1941 = vmatprep.subr.mxu0 0.0
        %1942 = vmatpush1.msra.mxu0 0.0
        %1943 = vmatprep.subr.mxu0 0.0
        %1944 = vmatpush1.msra.mxu0 0.0
        %1945 = vmatprep.subr.mxu0 0.0
        %1946 = vmatpush1.msra.mxu0 0.0
        %1947 = vmatprep.subr.mxu0 0.0
        %1948 = vmatpush1.msra.mxu0 0.0
        %1949 = vmatprep.subr.mxu0 0.0
        %1950 = vmatpush1.msra.mxu0 0.0
        %1951 = vmatprep.subr.mxu0 0.0
        %1952 = vmatpush1.msra.mxu0 0.0
        %1953 = vmatprep.subr.mxu0 %v1771
        %1954 = vmatpush1.msra.mxu0 %v1770
        %1955 = vmatprep.subr.mxu0 0.0
        %1956 = vmatpush2.msra.mxu0 0.0
        %1957 = vmatprep.subr.mxu0 0.0
        %1958 = vmatpush2.msra.mxu0 0.0
        %1959 = vmatprep.subr.mxu0 0.0
        %1960 = vmatpush2.msra.mxu0 0.0
        %1961 = vmatprep.subr.mxu0 0.0
        %1962 = vmatpush2.msra.mxu0 0.0
        %1963 = vmatprep.subr.mxu0 0.0
        %1964 = vmatpush2.msra.mxu0 0.0
        %1965 = vmatprep.subr.mxu0 0.0
        %1966 = vmatpush2.msra.mxu0 0.0
        %1967 = vmatprep.subr.mxu0 0.0
        %1968 = vmatpush2.msra.mxu0 0.0
        %1969 = vmatprep.subr.mxu0 0.0
        %1970 = vmatpush2.msra.mxu0 0.0
        %1971 = vmatprep.subr.mxu0 0.0
        %1972 = vmatpush2.msra.mxu0 0.0
        %1973 = vmatprep.subr.mxu0 0.0
        %1974 = vmatpush2.msra.mxu0 0.0
        %1975 = vmatprep.subr.mxu0 0.0
        %1976 = vmatpush2.msra.mxu0 0.0
        %1977 = vmatprep.subr.mxu0 0.0
        %1978 = vmatpush2.msra.mxu0 0.0
        %1979 = vmatprep.subr.mxu0 0.0
        %1980 = vmatpush2.msra.mxu0 0.0
        %1981 = vmatprep.subr.mxu0 0.0
        %1982 = vmatpush2.msra.mxu0 0.0
        %1983 = vmatprep.subr.mxu0 0.0
        %1984 = vmatpush2.msra.mxu0 0.0
        %1985 = vmatprep.subr.mxu0 0.0
        %1986 = vmatpush2.msra.mxu0 0.0
        %1987 = vmatprep.mubr.f32.mxu0 0.0
        %1988 = vmatmul.mubr.f32.gmra.mxu0 %v1779
        %v1989 = vpop.f32.mrf.mxu0
        %v1990 = vadd.f32 %v1776, %v1989
        %v1991 = vpop.f32.mrf.mxu0
        %v1992 = vadd.f32 %v1776, %v1991
        %1993 = vdwg.mxu0
        %1994 = vmatprep.subr.mxu0 0.0
        %1995 = vmatpush1.msra.mxu0 0.0
        %1996 = vmatprep.subr.mxu0 0.0
        %1997 = vmatpush1.msra.mxu0 0.0
        %1998 = vmatprep.subr.mxu0 0.0
        %1999 = vmatpush1.msra.mxu0 0.0
        %2000 = vmatprep.subr.mxu0 0.0
        %2001 = vmatpush1.msra.mxu0 0.0
        %2002 = vmatprep.subr.mxu0 0.0
        %2003 = vmatpush1.msra.mxu0 0.0
        %2004 = vmatprep.subr.mxu0 0.0
        %2005 = vmatpush1.msra.mxu0 0.0
        %2006 = vmatprep.subr.mxu0 0.0
        %2007 = vmatpush1.msra.mxu0 0.0
        %2008 = vmatprep.subr.mxu0 0.0
        %2009 = vmatpush1.msra.mxu0 0.0
        %2010 = vmatprep.subr.mxu0 0.0
        %2011 = vmatpush1.msra.mxu0 0.0
        %2012 = vmatprep.subr.mxu0 0.0
        %2013 = vmatpush1.msra.mxu0 0.0
        %2014 = vmatprep.subr.mxu0 0.0
        %2015 = vmatpush1.msra.mxu0 0.0
        %2016 = vmatprep.subr.mxu0 0.0
        %2017 = vmatpush1.msra.mxu0 0.0
        %2018 = vmatprep.subr.mxu0 0.0
        %2019 = vmatpush1.msra.mxu0 0.0
        %2020 = vmatprep.subr.mxu0 0.0
        %2021 = vmatpush1.msra.mxu0 0.0
        %2022 = vmatprep.subr.mxu0 0.0
        %2023 = vmatpush1.msra.mxu0 0.0
        %2024 = vmatprep.subr.mxu0 0.0
        %2025 = vmatpush1.msra.mxu0 %v1772
        %2026 = vmatprep.subr.mxu0 0.0
        %2027 = vmatpush2.msra.mxu0 0.0
        %2028 = vmatprep.subr.mxu0 0.0
        %2029 = vmatpush2.msra.mxu0 0.0
        %2030 = vmatprep.subr.mxu0 0.0
        %2031 = vmatpush2.msra.mxu0 0.0
        %2032 = vmatprep.subr.mxu0 0.0
        %2033 = vmatpush2.msra.mxu0 0.0
        %2034 = vmatprep.subr.mxu0 0.0
        %2035 = vmatpush2.msra.mxu0 0.0
        %2036 = vmatprep.subr.mxu0 0.0
        %2037 = vmatpush2.msra.mxu0 0.0
        %2038 = vmatprep.subr.mxu0 0.0
        %2039 = vmatpush2.msra.mxu0 0.0
        %2040 = vmatprep.subr.mxu0 0.0
        %2041 = vmatpush2.msra.mxu0 0.0
        %2042 = vmatprep.subr.mxu0 0.0
        %2043 = vmatpush2.msra.mxu0 0.0
        %2044 = vmatprep.subr.mxu0 0.0
        %2045 = vmatpush2.msra.mxu0 0.0
        %2046 = vmatprep.subr.mxu0 0.0
        %2047 = vmatpush2.msra.mxu0 0.0
        %2048 = vmatprep.subr.mxu0 0.0
        %2049 = vmatpush2.msra.mxu0 0.0
        %2050 = vmatprep.subr.mxu0 0.0
        %2051 = vmatpush2.msra.mxu0 0.0
        %2052 = vmatprep.subr.mxu0 0.0
        %2053 = vmatpush2.msra.mxu0 0.0
        %2054 = vmatprep.subr.mxu0 0.0
        %2055 = vmatpush2.msra.mxu0 0.0
        %2056 = vmatprep.subr.mxu0 0.0
        %2057 = vmatpush2.msra.mxu0 0.0
        %2058 = vmatprep.mubr.f32.mxu0 0.0
        %2059 = vmatmul.mubr.f32.gmra.mxu0 %v1779
        %v2060 = vpop.f32.mrf.mxu0
        %v2061 = vadd.f32 %v1776, %v2060
        %v2062 = vpop.f32.mrf.mxu0
        %2063 = vdwg.mxu0
        %2064 = vst [vmem:[%s226] sm:$0xff] %v1848
        %2065 = vst [vmem:[%s226 + $0x8] sm:$0xff] %v1850
        %2066 = vst [vmem:[%s226 + $0x10] sm:$0xff] %v1919
        %2067 = vst [vmem:[%s226 + $0x18] sm:$0xff] %v1921
        %2068 = vst [vmem:[%s226 + $0x20] sm:$0xff] %v1990
        %2069 = vst [vmem:[%s226 + $0x28] sm:$0xff] %v1992
        %2070 = vst [vmem:[%s226 + $0x30] sm:$0xff] %v2061
        %s2071 = sand.u32 %s119, 1
        %s2072 = scalar_lea.sflag [#allocation4], %s2071
        %s2073 = sand.u32 %s119, 1
        %s2074 = smul.addr %s2073, 56
        %s2075 = scalar_lea.vmem [#allocation7], %s2074
        // Predicated region
        $region45: #{tpu_custom_call.1} parent=35 // pred_check
          %p2076 = pneg %p129
        $region46: #{tpu_custom_call.1} parent=35 // pred_check_branch
          %2078 = sbr.rel (%p2076) target = $region48
        $region47: #{tpu_custom_call.1} parent=35 // pred_region
          %s2080 = ssub.s32 896, 896
          %2081 = vsyncadd %s2072, %s2080
          %s2082 = smul.addr %s22, 7
          %s2083 = smul.addr %s2082, 128
          %s2084 = scalar_lea.hbm %s4, %s2083
          %s2086 = sshll.u32 %s2075, 4
          %s2087 = int_to_ptr.vmem [resolvable:$true] %s2086
          %2089 = dma.vmem_to_hbm [thread:$0]  %s2087, 896, %s2084, %s2072
        $region48: #{tpu_custom_call.1} parent=35 // pred_fallthru
          _
      $region36: #{tpu_custom_call.1} parent=5 // pred_fallthru
        _
      %p2090 = scmp.le.s32.totalorder 2, %s17
      // Predicated region
      $region49: #{tpu_custom_call.1} parent=5 // pred_check
        %p2091 = pneg %p2090
      $region50: #{tpu_custom_call.1} parent=5 // pred_check_branch
        %2093 = sbr.rel (%p2091) target = $region52
      $region51: #{tpu_custom_call.1} parent=5 // pred_region
        %s2094 = ssub.s32 %s17, 2
        // Predicated region
        $region53: #{tpu_custom_call.1} parent=51 // pred_check
          %p2095 = pneg %p135
        $region54: #{tpu_custom_call.1} parent=51 // pred_check_branch
          %2097 = sbr.rel (%p2095) target = $region56
        $region55: #{tpu_custom_call.1} parent=51 // pred_region
          %s2098 = sand.u32 %s120, 1
          %s2099 = scalar_lea.sflag [#allocation4], %s2098
          %s2100 = sand.u32 %s120, 1
          %s2101 = smul.addr %s2100, 56
          %s2102 = scalar_lea.vmem [#allocation7], %s2101
          %2103 = dma.done %s2099, 896
        $region56: #{tpu_custom_call.1} parent=51 // pred_fallthru
          _
      $region52: #{tpu_custom_call.1} parent=5 // pred_fallthru
        _
    $region6: #{tpu_custom_call.1} parent=1 // loop_footer
      %s21 = sadd.s32 1, %s17
    $region7: #{tpu_custom_call.1} parent=1 // loop_footer_branch
      %16 = sbr.rel target = $region3
    $region8: #{tpu_custom_call.1} parent=1 // loop_exit
      _
    %2104 = vsyncpa [#allocation3], 1
    %s2105 = scalar_lea.sflag [#allocation3], 1
    %2106 = vsyncpa %s2105, 1
    %2107 = vsyncpa [#allocation6], 1
    %2108 = vsyncpa [#allocation4], 1
    %s2109 = scalar_lea.sflag [#allocation4], 1
    %2110 = vsyncpa %s2109, 1

</llo_original>
